<compile_context>
chip_gen: v5e
topology: v5e:2x2
jax: 0.10.0
libtpu: 0.0.40
codegen_flags: <defaults>
</compile_context>

<pallas_src>
import jax
import jax.numpy as jnp
import numpy as np
from jax.experimental import pallas as pl
from jax.experimental.pallas import tpu as pltpu


def _round_up(n, m):
    return ((n + m - 1) // m) * m


def _make_mlp_kernel(num_layers):
    """Fused MLP over one (TB, input_dim) batch tile.

    refs = (w1, b1, ..., wL, bL, out). x arrives f32 and is cast to bf16
    in-kernel; weights are bf16; each dot accumulates in f32 via
    preferred_element_type; bias-add + ReLU stay f32; activations downcast to
    bf16 just before the next dot. Dropout is the eval-mode identity.
    """
    def kernel(x_ref, *refs):
        o_ref = refs[-1]
        h = x_ref[...].astype(jnp.bfloat16)
        for i in range(num_layers):
            w_ref = refs[2 * i]
            b_ref = refs[2 * i + 1]
            h = jnp.dot(h, w_ref[...],
                        preferred_element_type=jnp.float32) + b_ref[...]
            if i < num_layers - 1:
                h = jnp.maximum(h, 0.0).astype(jnp.bfloat16)
        o_ref[...] = h.astype(o_ref.dtype)
    return kernel


def pack_params(params):
    """One-time packing (call at init, NOT per forward).

    Pads every layer's output dim to a multiple of 128 (zero-fill is exact
    through Linear+ReLU), casts weights to bf16 (MXU-native, half the DMA
    bytes) and keeps biases f32. The first layer's input dim is left exactly
    as-is so the layer-1 contraction runs at K = input_dim with no dead MXU
    work.
    """
    packed = []
    prev_out_p = None
    for i, (w, b) in enumerate(params):
        d_in, d_out = w.shape
        d_in_p = d_in if i == 0 else prev_out_p
        d_out_p = _round_up(d_out, 128)
        wp = jnp.zeros((d_in_p, d_out_p), jnp.bfloat16)
        wp = wp.at[:d_in, :d_out].set(w.astype(jnp.bfloat16))
        bp = jnp.zeros((1, d_out_p), jnp.float32)
        bp = bp.at[:, :d_out].set(jnp.reshape(b, (1, -1)).astype(jnp.float32))
        packed.append((wp, bp))
        prev_out_p = d_out_p
    return packed


def brain_state_classifier_forward(x, packed_params, num_classes, *,
                                   max_batch_tile=512):
    """Fused eval-mode forward.

    x: (B, input_dim) float32
    packed_params: output of pack_params()
    returns: (B, num_classes) float32 logits
    """
    B, in_dim = x.shape
    num_layers = len(packed_params)
    out_dim_p = packed_params[-1][0].shape[1]

    # ---- batch tiling -------------------------------------------------------
    # Tiles are multiples of 128 (MXU rows / bf16 sublane pack). For large
    # batches we cap at max_batch_tile to amortize the ~0.35us per-grid-step
    # overhead, then rebalance the tile so batch padding stays < 128 rows per
    # tile instead of padding B up to a whole extra tile. For B >= 256 we use
    # at least 2 tiles so the "parallel" axis can split across v7x's 2 TCs.
    tb_cap = max(128, (max_batch_tile // 128) * 128)
    num_tiles = max(1, pl.cdiv(B, tb_cap))
    if num_tiles == 1 and B >= 256:
        num_tiles = 2
    TB = _round_up(pl.cdiv(B, num_tiles), 128)
    B_pad = num_tiles * TB

    xp = x if B_pad == B else jnp.pad(x, ((0, B_pad - B), (0, 0)))

    # ---- specs --------------------------------------------------------------
    # x / out tiles stream per grid step; weights & biases use a constant
    # index_map so they are fetched once and stay VMEM-resident.
    x_spec = pl.BlockSpec((TB, in_dim), lambda i: (i, 0))

    def resident(shape):
        return pl.BlockSpec(shape, lambda i: (0, 0))

    in_specs = [x_spec]
    flat_args = [xp]
    for (wp, bp) in packed_params:
        in_specs.append(resident(wp.shape))
        in_specs.append(resident(bp.shape))
        flat_args.append(wp)
        flat_args.append(bp)

    out_spec = pl.BlockSpec((TB, out_dim_p), lambda i: (i, 0))

    # ---- advisory cost estimate --------------------------------------------
    flops = 0
    bytes_accessed = int(xp.size) * 4 + B_pad * out_dim_p * 2
    for (wp, bp) in packed_params:
        flops += 2 * B_pad * int(wp.shape[0]) * int(wp.shape[1])
        bytes_accessed += int(wp.size) * 2 + int(bp.size) * 4
    cost = pl.CostEstimate(flops=flops, transcendentals=0,
                           bytes_accessed=bytes_accessed)

    # NOTE: plain "parallel" is portable across 1-TC (v5e/v6e) and 2-TC (v7x)
    # chips; with >=2 tiles the batch axis can be sharded across v7x cores.
    out_padded = pl.pallas_call(
        _make_mlp_kernel(num_layers),
        out_shape=jax.ShapeDtypeStruct((B_pad, out_dim_p), jnp.bfloat16),
        grid=(num_tiles,),
        in_specs=in_specs,
        out_specs=out_spec,
        compiler_params=pltpu.CompilerParams(
            dimension_semantics=("parallel",),
            vmem_limit_bytes=32 * 1024 * 1024,
        ),
        cost_estimate=cost,
    )(*flat_args)

    return out_padded[:B, :num_classes].astype(jnp.float32)


def init_params(key, input_dim, hidden_dims, num_classes):
    """PyTorch-style Linear init: U(-1/sqrt(fan_in), 1/sqrt(fan_in)).
    Weights stored (in_features, out_features) so forward is x @ W + b."""
    dims = [input_dim] + list(hidden_dims) + [num_classes]
    params = []
    for i in range(len(dims) - 1):
        key, kw, kb = jax.random.split(key, 3)
        fan_in, fan_out = dims[i], dims[i + 1]
        bound = 1.0 / np.sqrt(fan_in)
        w = jax.random.uniform(kw, (fan_in, fan_out), jnp.float32, -bound, bound)
        b = jax.random.uniform(kb, (1, fan_out), jnp.float32, -bound, bound)
        params.append((w, b))
    return params


def reference_forward(x, params, compute_dtype=jnp.float32):
    """Pure-JAX reference (eval mode). compute_dtype=bfloat16 mirrors the
    kernel's bf16-operand / f32-accumulate path."""
    h = x.astype(compute_dtype)
    for i, (w, b) in enumerate(params):
        h = jnp.dot(h, w.astype(compute_dtype),
                    preferred_element_type=jnp.float32) + b
        if i < len(params) - 1:
            h = jnp.maximum(h, 0.0).astype(compute_dtype)
    return h.astype(jnp.float32)


if __name__ == "__main__":
    # Small, module-consistent shapes (module defaults).
    batch = 8
    input_dim = 64
    hidden_dims = [512, 256, 128]
    num_classes = 3

    key = jax.random.PRNGKey(0)
    key, kx = jax.random.split(key)
    x = jax.random.normal(kx, (batch, input_dim), jnp.float32)
    params = init_params(key, input_dim, hidden_dims, num_classes)

    # One-time weight packing (padding + bf16 cast hoisted out of the call path).
    packed = pack_params(params)

    out = brain_state_classifier_forward(x, packed, num_classes)
    out = jax.block_until_ready(out)
    assert out.shape == (batch, num_classes)

    # Tight check vs a reference using the same bf16-operand / f32-accumulate
    # math as the kernel ...
    ref_bf16 = jax.block_until_ready(
        reference_forward(x, params, compute_dtype=jnp.bfloat16))
    np.testing.assert_allclose(np.asarray(out), np.asarray(ref_bf16),
                               rtol=1e-2, atol=1e-2)
    # ... and a loose sanity check vs the full-f32 PyTorch-equivalent forward.
    ref_f32 = jax.block_until_ready(reference_forward(x, params))
    np.testing.assert_allclose(np.asarray(out), np.asarray(ref_f32),
                               rtol=5e-2, atol=5e-2)

    print("KERNEL_OK")
</pallas_src>

<mosaic_0001>
module attributes {stable_mosaic.version = 11 : i64} {
  func.func @kernel(%arg0: i32, %arg1: memref<128x64xf32, #tpu.memory_space<vmem>>, %arg2: memref<64x512xbf16, #tpu.memory_space<vmem>>, %arg3: memref<1x512xf32, #tpu.memory_space<vmem>>, %arg4: memref<512x256xbf16, #tpu.memory_space<vmem>>, %arg5: memref<1x256xf32, #tpu.memory_space<vmem>>, %arg6: memref<256x128xbf16, #tpu.memory_space<vmem>>, %arg7: memref<1x128xf32, #tpu.memory_space<vmem>>, %arg8: memref<128x128xbf16, #tpu.memory_space<vmem>>, %arg9: memref<1x128xf32, #tpu.memory_space<vmem>>, %arg10: memref<128x128xbf16, #tpu.memory_space<vmem>>) attributes {dimension_semantics = [#tpu.dimension_semantics<parallel>], iteration_bounds = array<i64: 1>, scalar_prefetch = 0 : i64, scratch_operands = 0 : i64, tpu.core_type = #tpu.core_type<tc>, window_params = [{transform_indices = @transform_0, window_bounds = array<i64: 128, 64>}, {pipeline_mode = #tpu.pipeline_mode<synchronous>, transform_indices = @transform_1, window_bounds = array<i64: 64, 512>}, {pipeline_mode = #tpu.pipeline_mode<synchronous>, transform_indices = @transform_2, window_bounds = array<i64: 1, 512>}, {pipeline_mode = #tpu.pipeline_mode<synchronous>, transform_indices = @transform_3, window_bounds = array<i64: 512, 256>}, {pipeline_mode = #tpu.pipeline_mode<synchronous>, transform_indices = @transform_4, window_bounds = array<i64: 1, 256>}, {pipeline_mode = #tpu.pipeline_mode<synchronous>, transform_indices = @transform_5, window_bounds = array<i64: 256, 128>}, {pipeline_mode = #tpu.pipeline_mode<synchronous>, transform_indices = @transform_6, window_bounds = array<i64: 1, 128>}, {pipeline_mode = #tpu.pipeline_mode<synchronous>, transform_indices = @transform_7, window_bounds = array<i64: 128, 128>}, {pipeline_mode = #tpu.pipeline_mode<synchronous>, transform_indices = @transform_8, window_bounds = array<i64: 1, 128>}, {transform_indices = @transform_9, window_bounds = array<i64: 128, 128>}]} {
    %c0 = arith.constant 0 : index
    %c0_0 = arith.constant 0 : index
    %0 = vector.load %arg1[%c0, %c0_0] : memref<128x64xf32, #tpu.memory_space<vmem>>, vector<128x64xf32>
    %1 = arith.truncf %0 : vector<128x64xf32> to vector<128x64xbf16>
    %c0_1 = arith.constant 0 : index
    %c0_2 = arith.constant 0 : index
    %2 = vector.load %arg2[%c0_1, %c0_2] : memref<64x512xbf16, #tpu.memory_space<vmem>>, vector<64x512xbf16>
    %cst = arith.constant dense<0.000000e+00> : vector<128x512xf32>
    %3 = tpu.matmul %1, %2, %cst {dimension_numbers = #tpu.dot_dimension_numbers<[1], [0], [0], [1], [0, 0, 1, 1], [], []>} : vector<128x64xbf16>, vector<64x512xbf16>, vector<128x512xf32> -> vector<128x512xf32>
    %c0_3 = arith.constant 0 : index
    %c0_4 = arith.constant 0 : index
    %4 = vector.load %arg3[%c0_3, %c0_4] : memref<1x512xf32, #tpu.memory_space<vmem>>, vector<1x512xf32>
    %5 = vector.broadcast %4 : vector<1x512xf32> to vector<128x512xf32>
    %6 = arith.addf %3, %5 : vector<128x512xf32>
    %cst_5 = arith.constant 0.000000e+00 : f32
    %7 = vector.broadcast %cst_5 : f32 to vector<128x512xf32>
    %8 = arith.maximumf %6, %7 : vector<128x512xf32>
    %9 = arith.truncf %8 : vector<128x512xf32> to vector<128x512xbf16>
    %c0_6 = arith.constant 0 : index
    %c0_7 = arith.constant 0 : index
    %10 = vector.load %arg4[%c0_6, %c0_7] : memref<512x256xbf16, #tpu.memory_space<vmem>>, vector<512x256xbf16>
    %cst_8 = arith.constant dense<0.000000e+00> : vector<128x256xf32>
    %11 = tpu.matmul %9, %10, %cst_8 {dimension_numbers = #tpu.dot_dimension_numbers<[1], [0], [0], [1], [0, 0, 1, 1], [], []>} : vector<128x512xbf16>, vector<512x256xbf16>, vector<128x256xf32> -> vector<128x256xf32>
    %c0_9 = arith.constant 0 : index
    %c0_10 = arith.constant 0 : index
    %12 = vector.load %arg5[%c0_9, %c0_10] : memref<1x256xf32, #tpu.memory_space<vmem>>, vector<1x256xf32>
    %13 = vector.broadcast %12 : vector<1x256xf32> to vector<128x256xf32>
    %14 = arith.addf %11, %13 : vector<128x256xf32>
    %cst_11 = arith.constant 0.000000e+00 : f32
    %15 = vector.broadcast %cst_11 : f32 to vector<128x256xf32>
    %16 = arith.maximumf %14, %15 : vector<128x256xf32>
    %17 = arith.truncf %16 : vector<128x256xf32> to vector<128x256xbf16>
    %c0_12 = arith.constant 0 : index
    %c0_13 = arith.constant 0 : index
    %18 = vector.load %arg6[%c0_12, %c0_13] : memref<256x128xbf16, #tpu.memory_space<vmem>>, vector<256x128xbf16>
    %cst_14 = arith.constant dense<0.000000e+00> : vector<128x128xf32>
    %19 = tpu.matmul %17, %18, %cst_14 {dimension_numbers = #tpu.dot_dimension_numbers<[1], [0], [0], [1], [0, 0, 1, 1], [], []>} : vector<128x256xbf16>, vector<256x128xbf16>, vector<128x128xf32> -> vector<128x128xf32>
    %c0_15 = arith.constant 0 : index
    %c0_16 = arith.constant 0 : index
    %20 = vector.load %arg7[%c0_15, %c0_16] : memref<1x128xf32, #tpu.memory_space<vmem>>, vector<1x128xf32>
    %21 = vector.broadcast %20 : vector<1x128xf32> to vector<128x128xf32>
    %22 = arith.addf %19, %21 : vector<128x128xf32>
    %cst_17 = arith.constant 0.000000e+00 : f32
    %23 = vector.broadcast %cst_17 : f32 to vector<128x128xf32>
    %24 = arith.maximumf %22, %23 : vector<128x128xf32>
    %25 = arith.truncf %24 : vector<128x128xf32> to vector<128x128xbf16>
    %c0_18 = arith.constant 0 : index
    %c0_19 = arith.constant 0 : index
    %26 = vector.load %arg8[%c0_18, %c0_19] : memref<128x128xbf16, #tpu.memory_space<vmem>>, vector<128x128xbf16>
    %cst_20 = arith.constant dense<0.000000e+00> : vector<128x128xf32>
    %27 = tpu.matmul %25, %26, %cst_20 {dimension_numbers = #tpu.dot_dimension_numbers<[1], [0], [0], [1], [0, 0, 1, 1], [], []>} : vector<128x128xbf16>, vector<128x128xbf16>, vector<128x128xf32> -> vector<128x128xf32>
    %c0_21 = arith.constant 0 : index
    %c0_22 = arith.constant 0 : index
    %28 = vector.load %arg9[%c0_21, %c0_22] : memref<1x128xf32, #tpu.memory_space<vmem>>, vector<1x128xf32>
    %29 = vector.broadcast %28 : vector<1x128xf32> to vector<128x128xf32>
    %30 = arith.addf %27, %29 : vector<128x128xf32>
    %31 = arith.truncf %30 : vector<128x128xf32> to vector<128x128xbf16>
    %c0_23 = arith.constant 0 : index
    %c0_24 = arith.constant 0 : index
    %32 = vector.load %arg10[%c0_23, %c0_24] : memref<128x128xbf16, #tpu.memory_space<vmem>>, vector<128x128xbf16>
    tpu.vector_store %arg10[%c0_23, %c0_24], %31 {strides = array<i32>} : memref<128x128xbf16, #tpu.memory_space<vmem>>, vector<128x128xbf16>,
    return
  }
  func.func @transform_0(%arg0: i32) -> (i32, i32) {
    %c0_i32 = arith.constant 0 : i32
    %c0_i32_0 = arith.constant 0 : i32
    return %arg0, %c0_i32 : i32, i32
  }
  func.func @transform_1(%arg0: i32) -> (i32, i32) {
    %c0_i32 = arith.constant 0 : i32
    %c0_i32_0 = arith.constant 0 : i32
    %c0_i32_1 = arith.constant 0 : i32
    return %c0_i32, %c0_i32_0 : i32, i32
  }
  func.func @transform_2(%arg0: i32) -> (i32, i32) {
    %c0_i32 = arith.constant 0 : i32
    %c0_i32_0 = arith.constant 0 : i32
    %c0_i32_1 = arith.constant 0 : i32
    return %c0_i32, %c0_i32_0 : i32, i32
  }
  func.func @transform_3(%arg0: i32) -> (i32, i32) {
    %c0_i32 = arith.constant 0 : i32
    %c0_i32_0 = arith.constant 0 : i32
    %c0_i32_1 = arith.constant 0 : i32
    return %c0_i32, %c0_i32_0 : i32, i32
  }
  func.func @transform_4(%arg0: i32) -> (i32, i32) {
    %c0_i32 = arith.constant 0 : i32
    %c0_i32_0 = arith.constant 0 : i32
    %c0_i32_1 = arith.constant 0 : i32
    return %c0_i32, %c0_i32_0 : i32, i32
  }
  func.func @transform_5(%arg0: i32) -> (i32, i32) {
    %c0_i32 = arith.constant 0 : i32
    %c0_i32_0 = arith.constant 0 : i32
    %c0_i32_1 = arith.constant 0 : i32
    return %c0_i32, %c0_i32_0 : i32, i32
  }
  func.func @transform_6(%arg0: i32) -> (i32, i32) {
    %c0_i32 = arith.constant 0 : i32
    %c0_i32_0 = arith.constant 0 : i32
    %c0_i32_1 = arith.constant 0 : i32
    return %c0_i32, %c0_i32_0 : i32, i32
  }
  func.func @transform_7(%arg0: i32) -> (i32, i32) {
    %c0_i32 = arith.constant 0 : i32
    %c0_i32_0 = arith.constant 0 : i32
    %c0_i32_1 = arith.constant 0 : i32
    return %c0_i32, %c0_i32_0 : i32, i32
  }
  func.func @transform_8(%arg0: i32) -> (i32, i32) {
    %c0_i32 = arith.constant 0 : i32
    %c0_i32_0 = arith.constant 0 : i32
    %c0_i32_1 = arith.constant 0 : i32
    return %c0_i32, %c0_i32_0 : i32, i32
  }
  func.func @transform_9(%arg0: i32) -> (i32, i32) {
    %c0_i32 = arith.constant 0 : i32
    %c0_i32_0 = arith.constant 0 : i32
    return %arg0, %c0_i32 : i32, i32
  }
}

</mosaic_0001>

<llo_original>
// kernel: tpu_custom_call.1
$region0: #{tpu_custom_call.1}
  #allocation0 [shape = 'u32[]', space=smem, size = 0x4, offset = 0x4, fixed_abs, tag = 'smem constant byte address 0x4 - core index']
  #allocation1 [shape = 'u32[72,128]{1,0:T(1,128)}', space=vmem, size = 0x9000, scoped, tag = 'internal scratch']
  %s0 = inlined_call_operand.vmem [shape: f32[128,64], index: 0, kind: input, shape index: {}]
  %s1 = inlined_call_operand.vmem [shape: bf16[64,512], index: 1, kind: input, shape index: {}]
  %s2 = inlined_call_operand.hbm [shape: f32[1,512], index: 2, kind: input, shape index: {}]
  %s3 = inlined_call_operand.hbm [shape: bf16[512,256], index: 3, kind: input, shape index: {}]
  %s4 = inlined_call_operand.vmem [shape: f32[1,256], index: 4, kind: input, shape index: {}]
  %s5 = inlined_call_operand.hbm [shape: bf16[256,128], index: 5, kind: input, shape index: {}]
  %s6 = inlined_call_operand.vmem [shape: f32[1,128], index: 6, kind: input, shape index: {}]
  %s7 = inlined_call_operand.vmem [shape: bf16[128,128], index: 7, kind: input, shape index: {}]
  %s8 = inlined_call_operand.vmem [shape: f32[1,128], index: 8, kind: input, shape index: {}]
  %s9 = inlined_call_operand.hbm [shape: bf16[128,128], index: 9, kind: output, shape index: {}]
  %s10 = sld [smem:[#allocation0]]
  $region58: #{tpu_custom_call.1} parent=0
    _
  %s12 = ssub.s32 1, %s10
  %s13 = scalar_select 0, %s12, %s10
  $region1: #{tpu_custom_call.1} parent=0
    #allocation2 [shape = 'u8[2048]{0}', space=vmem, size = 0x800, scoped, tag = 'input window, operand 2, single buffered']
    #allocation3 [shape = 's32[1]{0}', space=sflag, size = 0x4, scoped, tag = 'scoped memory for tpu_custom_call.1']
    #allocation4 [shape = 's32[1]{0}', space=sflag, size = 0x4, scoped, tag = 'scoped memory for tpu_custom_call.1']
    #allocation5 [shape = 'u8[262144]{0}', space=vmem, size = 0x40000, scoped, tag = 'input window, operand 3, single buffered']
    #allocation6 [shape = 's32[1]{0}', space=sflag, size = 0x4, scoped, tag = 'scoped memory for tpu_custom_call.1']
    #allocation7 [shape = 'u8[65536]{0}', space=vmem, size = 0x10000, scoped, tag = 'input window, operand 5, single buffered']
    #allocation8 [shape = 'u8[32768]{0}', space=vmem, size = 0x8000, scoped, tag = 'output window, operand 0, single buffered']
    %14 = vsyncpa [#allocation3], 0
    %15 = vsyncpa [#allocation6], 0
    %16 = vsyncpa [#allocation4], 0
    // Predicated region
    $region2: #{tpu_custom_call.1} parent=1 // pred_check
      _
    $region3: #{tpu_custom_call.1} parent=1 // pred_check_branch
      %18 = sbr.rel (0) target = $region5
    $region4: #{tpu_custom_call.1} parent=1 // pred_region
      _
    $region5: #{tpu_custom_call.1} parent=1 // pred_fallthru
      _
    // Predicated region
    $region6: #{tpu_custom_call.1} parent=1 // pred_check
      _
    $region7: #{tpu_custom_call.1} parent=1 // pred_check_branch
      %20 = sbr.rel (0) target = $region9
    $region8: #{tpu_custom_call.1} parent=1 // pred_region
      _
    $region9: #{tpu_custom_call.1} parent=1 // pred_fallthru
      _
    // Predicated region
    $region10: #{tpu_custom_call.1} parent=1 // pred_check
      _
    $region11: #{tpu_custom_call.1} parent=1 // pred_check_branch
      %22 = sbr.rel (0) target = $region13
    $region12: #{tpu_custom_call.1} parent=1 // pred_region
      %24 = vsyncadd [#allocation3], 0
      %s26 = sshll.u32 %s2, 4
      %s27 = int_to_ptr.hbm [resolvable:$true] %s26
      %s28 = sshll.u32 [#allocation2], 4
      %s29 = int_to_ptr.vmem [resolvable:$true] %s28
      %31 = dma.hbm_to_vmem [thread:$0]  %s27, 64, %s29, [#allocation3]
    $region13: #{tpu_custom_call.1} parent=1 // pred_fallthru
      _
    // Predicated region
    $region14: #{tpu_custom_call.1} parent=1 // pred_check
      _
    $region15: #{tpu_custom_call.1} parent=1 // pred_check_branch
      %33 = sbr.rel (0) target = $region17
    $region16: #{tpu_custom_call.1} parent=1 // pred_region
      %35 = vsyncadd [#allocation6], 0
      %s36 = sshll.u32 %s3, 4
      %s37 = int_to_ptr.hbm [resolvable:$true] %s36
      %s38 = sshll.u32 [#allocation5], 4
      %s39 = int_to_ptr.vmem [resolvable:$true] %s38
      %44 = dma.hbm_to_vmem [thread:$0]  %s37, 8192, %s39, [#allocation6], 128, 128, 8
    $region17: #{tpu_custom_call.1} parent=1 // pred_fallthru
      _
    // Predicated region
    $region18: #{tpu_custom_call.1} parent=1 // pred_check
      _
    $region19: #{tpu_custom_call.1} parent=1 // pred_check_branch
      %46 = sbr.rel (0) target = $region21
    $region20: #{tpu_custom_call.1} parent=1 // pred_region
      _
    $region21: #{tpu_custom_call.1} parent=1 // pred_fallthru
      _
    // Predicated region
    $region22: #{tpu_custom_call.1} parent=1 // pred_check
      _
    $region23: #{tpu_custom_call.1} parent=1 // pred_check_branch
      %48 = sbr.rel (0) target = $region25
    $region24: #{tpu_custom_call.1} parent=1 // pred_region
      %50 = vsyncadd [#allocation6], 0
      %s51 = sshll.u32 %s5, 4
      %s52 = int_to_ptr.hbm [resolvable:$true] %s51
      %s53 = sshll.u32 [#allocation7], 4
      %s54 = int_to_ptr.vmem [resolvable:$true] %s53
      %59 = dma.hbm_to_vmem [thread:$0]  %s52, 2048, %s54, [#allocation6], 64, 64, 4
    $region25: #{tpu_custom_call.1} parent=1 // pred_fallthru
      _
    // Predicated region
    $region26: #{tpu_custom_call.1} parent=1 // pred_check
      _
    $region27: #{tpu_custom_call.1} parent=1 // pred_check_branch
      %61 = sbr.rel (0) target = $region29
    $region28: #{tpu_custom_call.1} parent=1 // pred_region
      _
    $region29: #{tpu_custom_call.1} parent=1 // pred_fallthru
      _
    // Predicated region
    $region30: #{tpu_custom_call.1} parent=1 // pred_check
      _
    $region31: #{tpu_custom_call.1} parent=1 // pred_check_branch
      %63 = sbr.rel (0) target = $region33
    $region32: #{tpu_custom_call.1} parent=1 // pred_region
      _
    $region33: #{tpu_custom_call.1} parent=1 // pred_fallthru
      _
    // Predicated region
    $region34: #{tpu_custom_call.1} parent=1 // pred_check
      _
    $region35: #{tpu_custom_call.1} parent=1 // pred_check_branch
      %65 = sbr.rel (0) target = $region37
    $region36: #{tpu_custom_call.1} parent=1 // pred_region
      _
    $region37: #{tpu_custom_call.1} parent=1 // pred_fallthru
      _
    // Predicated region
    $region38: #{tpu_custom_call.1} parent=1 // pred_check
      _
    $region39: #{tpu_custom_call.1} parent=1 // pred_check_branch
      %67 = sbr.rel (0) target = $region41
    $region40: #{tpu_custom_call.1} parent=1 // pred_region
      %69 = dma.done [#allocation3], 64
    $region41: #{tpu_custom_call.1} parent=1 // pred_fallthru
      _
    // Predicated region
    $region42: #{tpu_custom_call.1} parent=1 // pred_check
      _
    $region43: #{tpu_custom_call.1} parent=1 // pred_check_branch
      %71 = sbr.rel (0) target = $region45
    $region44: #{tpu_custom_call.1} parent=1 // pred_region
      %73 = dma.done [#allocation6], 8192
    $region45: #{tpu_custom_call.1} parent=1 // pred_fallthru
      _
    // Predicated region
    $region46: #{tpu_custom_call.1} parent=1 // pred_check
      _
    $region47: #{tpu_custom_call.1} parent=1 // pred_check_branch
      %75 = sbr.rel (0) target = $region49
    $region48: #{tpu_custom_call.1} parent=1 // pred_region
      %77 = dma.done [#allocation6], 2048
    $region49: #{tpu_custom_call.1} parent=1 // pred_fallthru
      _
    %v79 = vld [vmem:[%s0] sm:$0xff]
    %v80 = vld [vmem:[%s0 + $0x8] sm:$0xff]
    %v81 = vld [vmem:[%s0 + $0x10] sm:$0xff]
    %v82 = vld [vmem:[%s0 + $0x18] sm:$0xff]
    %v83 = vld [vmem:[%s0 + $0x20] sm:$0xff]
    %v84 = vld [vmem:[%s0 + $0x28] sm:$0xff]
    %v85 = vld [vmem:[%s0 + $0x30] sm:$0xff]
    %v86 = vld [vmem:[%s0 + $0x38] sm:$0xff]
    %v87 = vld [vmem:[%s0 + $0x40] sm:$0xff]
    %v88 = vld [vmem:[%s0 + $0x48] sm:$0xff]
    %v89 = vld [vmem:[%s0 + $0x50] sm:$0xff]
    %v90 = vld [vmem:[%s0 + $0x58] sm:$0xff]
    %v91 = vld [vmem:[%s0 + $0x60] sm:$0xff]
    %v92 = vld [vmem:[%s0 + $0x68] sm:$0xff]
    %v93 = vld [vmem:[%s0 + $0x70] sm:$0xff]
    %v94 = vld [vmem:[%s0 + $0x78] sm:$0xff]
    %v95 = vpack.c.bf16 %v80, %v79
    %v96 = vpack.c.bf16 %v82, %v81
    %v97 = vpack.c.bf16 %v84, %v83
    %v98 = vpack.c.bf16 %v86, %v85
    %v99 = vpack.c.bf16 %v88, %v87
    %v100 = vpack.c.bf16 %v90, %v89
    %v101 = vpack.c.bf16 %v92, %v91
    %v102 = vpack.c.bf16 %v94, %v93
    %v103 = vld [vmem:[%s1] sm:$0xff]
    %v104 = vld [vmem:[%s1 + $0x8] sm:$0xff]
    %v105 = vld [vmem:[%s1 + $0x10] sm:$0xff]
    %v106 = vld [vmem:[%s1 + $0x18] sm:$0xff]
    %v107 = vld [vmem:[%s1 + $0x20] sm:$0xff]
    %v108 = vld [vmem:[%s1 + $0x28] sm:$0xff]
    %v109 = vld [vmem:[%s1 + $0x30] sm:$0xff]
    %v110 = vld [vmem:[%s1 + $0x38] sm:$0xff]
    %v111 = vld [vmem:[%s1 + $0x40] sm:$0xff]
    %v112 = vld [vmem:[%s1 + $0x48] sm:$0xff]
    %v113 = vld [vmem:[%s1 + $0x50] sm:$0xff]
    %v114 = vld [vmem:[%s1 + $0x58] sm:$0xff]
    %v115 = vld [vmem:[%s1 + $0x60] sm:$0xff]
    %v116 = vld [vmem:[%s1 + $0x68] sm:$0xff]
    %v117 = vld [vmem:[%s1 + $0x70] sm:$0xff]
    %v118 = vld [vmem:[%s1 + $0x78] sm:$0xff]
    %v119 = vld [vmem:[#allocation2] sm:$0xf]
    %v121 = vperm.slane %v119, 0
    %v122 = vperm.slane %v119, 1
    %v123 = vperm.slane %v119, 2
    %v124 = vperm.slane %v119, 3
    %v145 = vunpack.c.l.b16 %v103
    %v146 = vunpack.c.h.b16 %v103
    %v147 = vunpack.c.l.b16 %v104
    %v148 = vunpack.c.h.b16 %v104
    %v149 = vunpack.c.l.b16 %v105
    %v150 = vunpack.c.h.b16 %v105
    %v151 = vunpack.c.l.b16 %v106
    %v152 = vunpack.c.h.b16 %v106
    %v153 = vunpack.c.l.b16 %v107
    %v154 = vunpack.c.h.b16 %v107
    %v155 = vunpack.c.l.b16 %v108
    %v156 = vunpack.c.h.b16 %v108
    %v157 = vunpack.c.l.b16 %v109
    %v158 = vunpack.c.h.b16 %v109
    %v159 = vunpack.c.l.b16 %v110
    %v160 = vunpack.c.h.b16 %v110
    %v161 = vunpack.c.l.b16 %v111
    %v162 = vunpack.c.h.b16 %v111
    %v163 = vunpack.c.l.b16 %v112
    %v164 = vunpack.c.h.b16 %v112
    %v165 = vunpack.c.l.b16 %v113
    %v166 = vunpack.c.h.b16 %v113
    %v167 = vunpack.c.l.b16 %v114
    %v168 = vunpack.c.h.b16 %v114
    %v169 = vunpack.c.l.b16 %v115
    %v170 = vunpack.c.h.b16 %v115
    %v171 = vunpack.c.l.b16 %v116
    %v172 = vunpack.c.h.b16 %v116
    %v173 = vunpack.c.l.b16 %v117
    %v174 = vunpack.c.h.b16 %v117
    %v175 = vunpack.c.l.b16 %v118
    %v176 = vunpack.c.h.b16 %v118
    %v177 = vpack.c.b16 %v149, %v145
    %v178 = vpack.c.b16 %v150, %v146
    %v179 = vpack.c.b16 %v151, %v147
    %v180 = vpack.c.b16 %v152, %v148
    %v181 = vpack.c.b16 %v157, %v153
    %v182 = vpack.c.b16 %v158, %v154
    %v183 = vpack.c.b16 %v159, %v155
    %v184 = vpack.c.b16 %v160, %v156
    %v185 = vpack.c.b16 %v165, %v161
    %v186 = vpack.c.b16 %v166, %v162
    %v187 = vpack.c.b16 %v167, %v163
    %v188 = vpack.c.b16 %v168, %v164
    %v189 = vpack.c.b16 %v173, %v169
    %v190 = vpack.c.b16 %v174, %v170
    %v191 = vpack.c.b16 %v175, %v171
    %v192 = vpack.c.b16 %v176, %v172
    %vm209 = vcmask 523264
    %v211 = vsel %vm209, %v95, 0
    %v214 = vsel %vm209, %v96, 0
    %v217 = vsel %vm209, %v97, 0
    %v220 = vsel %vm209, %v98, 0
    %v223 = vsel %vm209, %v99, 0
    %v226 = vsel %vm209, %v100, 0
    %v229 = vsel %vm209, %v101, 0
    %v232 = vsel %vm209, %v102, 0
    %234 = vmatpush.bf16.msra.mxu0 0
    %235 = vmatpush.bf16.msra.mxu0 0
    %236 = vmatpush.bf16.msra.mxu0 0
    %237 = vmatpush.bf16.msra.mxu0 0
    %238 = vmatpush.bf16.msra.mxu0 %v189
    %239 = vmatpush.bf16.msra.mxu0 %v185
    %240 = vmatpush.bf16.msra.mxu0 %v181
    %241 = vmatpush.bf16.msra.mxu0 %v177
    %242 = vmatmul.bf16.gmra.mxu0 %v211
    %v243 = vpop.f32.mrf.mxu0
    %v244 = vadd.f32 %v121, %v243
    %v245 = vpop.f32.mrf.mxu0
    %v246 = vadd.f32 %v121, %v245
    %247 = vmatmul.bf16.gmra.mxu0 %v214
    %v248 = vpop.f32.mrf.mxu0
    %v249 = vadd.f32 %v121, %v248
    %v250 = vpop.f32.mrf.mxu0
    %v251 = vadd.f32 %v121, %v250
    %252 = vmatmul.bf16.gmra.mxu0 %v217
    %v253 = vpop.f32.mrf.mxu0
    %v254 = vadd.f32 %v121, %v253
    %v255 = vpop.f32.mrf.mxu0
    %v256 = vadd.f32 %v121, %v255
    %257 = vmatmul.bf16.gmra.mxu0 %v220
    %v258 = vpop.f32.mrf.mxu0
    %v259 = vadd.f32 %v121, %v258
    %v260 = vpop.f32.mrf.mxu0
    %v261 = vadd.f32 %v121, %v260
    %262 = vmatmul.bf16.gmra.mxu0 %v223
    %v263 = vpop.f32.mrf.mxu0
    %v264 = vadd.f32 %v121, %v263
    %v265 = vpop.f32.mrf.mxu0
    %v266 = vadd.f32 %v121, %v265
    %267 = vmatmul.bf16.gmra.mxu0 %v226
    %v268 = vpop.f32.mrf.mxu0
    %v269 = vadd.f32 %v121, %v268
    %v270 = vpop.f32.mrf.mxu0
    %v271 = vadd.f32 %v121, %v270
    %272 = vmatmul.bf16.gmra.mxu0 %v229
    %v273 = vpop.f32.mrf.mxu0
    %v274 = vadd.f32 %v121, %v273
    %v275 = vpop.f32.mrf.mxu0
    %v276 = vadd.f32 %v121, %v275
    %277 = vmatmul.bf16.gmra.mxu0 %v232
    %v278 = vpop.f32.mrf.mxu0
    %v279 = vadd.f32 %v121, %v278
    %v280 = vpop.f32.mrf.mxu0
    %v281 = vadd.f32 %v121, %v280
    %282 = vdwg.mxu0
    %283 = vmatpush.bf16.msra.mxu0 0
    %284 = vmatpush.bf16.msra.mxu0 0
    %285 = vmatpush.bf16.msra.mxu0 0
    %286 = vmatpush.bf16.msra.mxu0 0
    %287 = vmatpush.bf16.msra.mxu0 %v190
    %288 = vmatpush.bf16.msra.mxu0 %v186
    %289 = vmatpush.bf16.msra.mxu0 %v182
    %290 = vmatpush.bf16.msra.mxu0 %v178
    %291 = vmatmul.bf16.gmra.mxu0 %v211
    %v292 = vpop.f32.mrf.mxu0
    %v293 = vadd.f32 %v122, %v292
    %v294 = vpop.f32.mrf.mxu0
    %v295 = vadd.f32 %v122, %v294
    %296 = vmatmul.bf16.gmra.mxu0 %v214
    %v297 = vpop.f32.mrf.mxu0
    %v298 = vadd.f32 %v122, %v297
    %v299 = vpop.f32.mrf.mxu0
    %v300 = vadd.f32 %v122, %v299
    %301 = vmatmul.bf16.gmra.mxu0 %v217
    %v302 = vpop.f32.mrf.mxu0
    %v303 = vadd.f32 %v122, %v302
    %v304 = vpop.f32.mrf.mxu0
    %v305 = vadd.f32 %v122, %v304
    %306 = vmatmul.bf16.gmra.mxu0 %v220
    %v307 = vpop.f32.mrf.mxu0
    %v308 = vadd.f32 %v122, %v307
    %v309 = vpop.f32.mrf.mxu0
    %v310 = vadd.f32 %v122, %v309
    %311 = vmatmul.bf16.gmra.mxu0 %v223
    %v312 = vpop.f32.mrf.mxu0
    %v313 = vadd.f32 %v122, %v312
    %v314 = vpop.f32.mrf.mxu0
    %v315 = vadd.f32 %v122, %v314
    %316 = vmatmul.bf16.gmra.mxu0 %v226
    %v317 = vpop.f32.mrf.mxu0
    %v318 = vadd.f32 %v122, %v317
    %v319 = vpop.f32.mrf.mxu0
    %v320 = vadd.f32 %v122, %v319
    %321 = vmatmul.bf16.gmra.mxu0 %v229
    %v322 = vpop.f32.mrf.mxu0
    %v323 = vadd.f32 %v122, %v322
    %v324 = vpop.f32.mrf.mxu0
    %v325 = vadd.f32 %v122, %v324
    %326 = vmatmul.bf16.gmra.mxu0 %v232
    %v327 = vpop.f32.mrf.mxu0
    %v328 = vadd.f32 %v122, %v327
    %v329 = vpop.f32.mrf.mxu0
    %v330 = vadd.f32 %v122, %v329
    %331 = vdwg.mxu0
    %332 = vmatpush.bf16.msra.mxu0 0
    %333 = vmatpush.bf16.msra.mxu0 0
    %334 = vmatpush.bf16.msra.mxu0 0
    %335 = vmatpush.bf16.msra.mxu0 0
    %336 = vmatpush.bf16.msra.mxu0 %v191
    %337 = vmatpush.bf16.msra.mxu0 %v187
    %338 = vmatpush.bf16.msra.mxu0 %v183
    %339 = vmatpush.bf16.msra.mxu0 %v179
    %340 = vmatmul.bf16.gmra.mxu0 %v211
    %v341 = vpop.f32.mrf.mxu0
    %v342 = vadd.f32 %v123, %v341
    %v343 = vpop.f32.mrf.mxu0
    %v344 = vadd.f32 %v123, %v343
    %345 = vmatmul.bf16.gmra.mxu0 %v214
    %v346 = vpop.f32.mrf.mxu0
    %v347 = vadd.f32 %v123, %v346
    %v348 = vpop.f32.mrf.mxu0
    %v349 = vadd.f32 %v123, %v348
    %350 = vmatmul.bf16.gmra.mxu0 %v217
    %v351 = vpop.f32.mrf.mxu0
    %v352 = vadd.f32 %v123, %v351
    %v353 = vpop.f32.mrf.mxu0
    %v354 = vadd.f32 %v123, %v353
    %355 = vmatmul.bf16.gmra.mxu0 %v220
    %v356 = vpop.f32.mrf.mxu0
    %v357 = vadd.f32 %v123, %v356
    %v358 = vpop.f32.mrf.mxu0
    %v359 = vadd.f32 %v123, %v358
    %360 = vmatmul.bf16.gmra.mxu0 %v223
    %v361 = vpop.f32.mrf.mxu0
    %v362 = vadd.f32 %v123, %v361
    %v363 = vpop.f32.mrf.mxu0
    %v364 = vadd.f32 %v123, %v363
    %365 = vmatmul.bf16.gmra.mxu0 %v226
    %v366 = vpop.f32.mrf.mxu0
    %v367 = vadd.f32 %v123, %v366
    %v368 = vpop.f32.mrf.mxu0
    %v369 = vadd.f32 %v123, %v368
    %370 = vmatmul.bf16.gmra.mxu0 %v229
    %v371 = vpop.f32.mrf.mxu0
    %v372 = vadd.f32 %v123, %v371
    %v373 = vpop.f32.mrf.mxu0
    %v374 = vadd.f32 %v123, %v373
    %375 = vmatmul.bf16.gmra.mxu0 %v232
    %v376 = vpop.f32.mrf.mxu0
    %v377 = vadd.f32 %v123, %v376
    %v378 = vpop.f32.mrf.mxu0
    %v379 = vadd.f32 %v123, %v378
    %380 = vdwg.mxu0
    %381 = vmatpush.bf16.msra.mxu0 0
    %382 = vmatpush.bf16.msra.mxu0 0
    %383 = vmatpush.bf16.msra.mxu0 0
    %384 = vmatpush.bf16.msra.mxu0 0
    %385 = vmatpush.bf16.msra.mxu0 %v192
    %386 = vmatpush.bf16.msra.mxu0 %v188
    %387 = vmatpush.bf16.msra.mxu0 %v184
    %388 = vmatpush.bf16.msra.mxu0 %v180
    %389 = vmatmul.bf16.gmra.mxu0 %v211
    %v390 = vpop.f32.mrf.mxu0
    %v391 = vadd.f32 %v124, %v390
    %v392 = vpop.f32.mrf.mxu0
    %v393 = vadd.f32 %v124, %v392
    %394 = vmatmul.bf16.gmra.mxu0 %v214
    %v395 = vpop.f32.mrf.mxu0
    %v396 = vadd.f32 %v124, %v395
    %v397 = vpop.f32.mrf.mxu0
    %v398 = vadd.f32 %v124, %v397
    %399 = vmatmul.bf16.gmra.mxu0 %v217
    %v400 = vpop.f32.mrf.mxu0
    %v401 = vadd.f32 %v124, %v400
    %v402 = vpop.f32.mrf.mxu0
    %v403 = vadd.f32 %v124, %v402
    %404 = vmatmul.bf16.gmra.mxu0 %v220
    %v405 = vpop.f32.mrf.mxu0
    %v406 = vadd.f32 %v124, %v405
    %v407 = vpop.f32.mrf.mxu0
    %v408 = vadd.f32 %v124, %v407
    %409 = vmatmul.bf16.gmra.mxu0 %v223
    %v410 = vpop.f32.mrf.mxu0
    %v411 = vadd.f32 %v124, %v410
    %v412 = vpop.f32.mrf.mxu0
    %v413 = vadd.f32 %v124, %v412
    %414 = vmatmul.bf16.gmra.mxu0 %v226
    %v415 = vpop.f32.mrf.mxu0
    %v416 = vadd.f32 %v124, %v415
    %v417 = vpop.f32.mrf.mxu0
    %v418 = vadd.f32 %v124, %v417
    %419 = vmatmul.bf16.gmra.mxu0 %v229
    %v420 = vpop.f32.mrf.mxu0
    %v421 = vadd.f32 %v124, %v420
    %v422 = vpop.f32.mrf.mxu0
    %v423 = vadd.f32 %v124, %v422
    %424 = vmatmul.bf16.gmra.mxu0 %v232
    %v425 = vpop.f32.mrf.mxu0
    %v426 = vadd.f32 %v124, %v425
    %v427 = vpop.f32.mrf.mxu0
    %v428 = vadd.f32 %v124, %v427
    %429 = vdwg.mxu0
    %v430 = vmax.f32 %v244, 0.0
    %v431 = vmax.f32 %v293, 0.0
    %v432 = vmax.f32 %v342, 0.0
    %v433 = vmax.f32 %v391, 0.0
    %v434 = vmax.f32 %v246, 0.0
    %v435 = vmax.f32 %v295, 0.0
    %v436 = vmax.f32 %v344, 0.0
    %v437 = vmax.f32 %v393, 0.0
    %v438 = vmax.f32 %v249, 0.0
    %v439 = vmax.f32 %v298, 0.0
    %v440 = vmax.f32 %v347, 0.0
    %v441 = vmax.f32 %v396, 0.0
    %v442 = vmax.f32 %v251, 0.0
    %v443 = vmax.f32 %v300, 0.0
    %v444 = vmax.f32 %v349, 0.0
    %v445 = vmax.f32 %v398, 0.0
    %v446 = vmax.f32 %v254, 0.0
    %v447 = vmax.f32 %v303, 0.0
    %v448 = vmax.f32 %v352, 0.0
    %v449 = vmax.f32 %v401, 0.0
    %v450 = vmax.f32 %v256, 0.0
    %v451 = vmax.f32 %v305, 0.0
    %v452 = vmax.f32 %v354, 0.0
    %v453 = vmax.f32 %v403, 0.0
    %v454 = vmax.f32 %v259, 0.0
    %v455 = vmax.f32 %v308, 0.0
    %v456 = vmax.f32 %v357, 0.0
    %v457 = vmax.f32 %v406, 0.0
    %v458 = vmax.f32 %v261, 0.0
    %v459 = vmax.f32 %v310, 0.0
    %v460 = vmax.f32 %v359, 0.0
    %v461 = vmax.f32 %v408, 0.0
    %v462 = vmax.f32 %v264, 0.0
    %v463 = vmax.f32 %v313, 0.0
    %v464 = vmax.f32 %v362, 0.0
    %v465 = vmax.f32 %v411, 0.0
    %v466 = vmax.f32 %v266, 0.0
    %v467 = vmax.f32 %v315, 0.0
    %v468 = vmax.f32 %v364, 0.0
    %v469 = vmax.f32 %v413, 0.0
    %v470 = vmax.f32 %v269, 0.0
    %v471 = vmax.f32 %v318, 0.0
    %v472 = vmax.f32 %v367, 0.0
    %v473 = vmax.f32 %v416, 0.0
    %v474 = vmax.f32 %v271, 0.0
    %v475 = vmax.f32 %v320, 0.0
    %v476 = vmax.f32 %v369, 0.0
    %v477 = vmax.f32 %v418, 0.0
    %v478 = vmax.f32 %v274, 0.0
    %v479 = vmax.f32 %v323, 0.0
    %v480 = vmax.f32 %v372, 0.0
    %v481 = vmax.f32 %v421, 0.0
    %v482 = vmax.f32 %v276, 0.0
    %v483 = vmax.f32 %v325, 0.0
    %v484 = vmax.f32 %v374, 0.0
    %v485 = vmax.f32 %v423, 0.0
    %v486 = vmax.f32 %v279, 0.0
    %v487 = vmax.f32 %v328, 0.0
    %v488 = vmax.f32 %v377, 0.0
    %v489 = vmax.f32 %v426, 0.0
    %v490 = vmax.f32 %v281, 0.0
    %v491 = vmax.f32 %v330, 0.0
    %v492 = vmax.f32 %v379, 0.0
    %v493 = vmax.f32 %v428, 0.0
    %v494 = vpack.c.bf16 %v434, %v430
    %v495 = vpack.c.bf16 %v435, %v431
    %v496 = vpack.c.bf16 %v436, %v432
    %v497 = vpack.c.bf16 %v437, %v433
    %v498 = vpack.c.bf16 %v442, %v438
    %v499 = vpack.c.bf16 %v443, %v439
    %v500 = vpack.c.bf16 %v444, %v440
    %v501 = vpack.c.bf16 %v445, %v441
    %v502 = vpack.c.bf16 %v450, %v446
    %v503 = vpack.c.bf16 %v451, %v447
    %v504 = vpack.c.bf16 %v452, %v448
    %v505 = vpack.c.bf16 %v453, %v449
    %v506 = vpack.c.bf16 %v458, %v454
    %v507 = vpack.c.bf16 %v459, %v455
    %v508 = vpack.c.bf16 %v460, %v456
    %v509 = vpack.c.bf16 %v461, %v457
    %v510 = vpack.c.bf16 %v466, %v462
    %v511 = vpack.c.bf16 %v467, %v463
    %v512 = vpack.c.bf16 %v468, %v464
    %v513 = vpack.c.bf16 %v469, %v465
    %v514 = vpack.c.bf16 %v474, %v470
    %v515 = vpack.c.bf16 %v475, %v471
    %v516 = vpack.c.bf16 %v476, %v472
    %v517 = vpack.c.bf16 %v477, %v473
    %v518 = vpack.c.bf16 %v482, %v478
    %v519 = vpack.c.bf16 %v483, %v479
    %v520 = vpack.c.bf16 %v484, %v480
    %v521 = vpack.c.bf16 %v485, %v481
    %v522 = vpack.c.bf16 %v490, %v486
    %v523 = vpack.c.bf16 %v491, %v487
    %v524 = vpack.c.bf16 %v492, %v488
    %v525 = vpack.c.bf16 %v493, %v489
    %v526 = vld [vmem:[#allocation5] sm:$0xff]
    %v527 = vld [vmem:[#allocation5 + $0x8] sm:$0xff]
    %v528 = vld [vmem:[#allocation5 + $0x10] sm:$0xff]
    %v529 = vld [vmem:[#allocation5 + $0x18] sm:$0xff]
    %v530 = vld [vmem:[#allocation5 + $0x20] sm:$0xff]
    %v531 = vld [vmem:[#allocation5 + $0x28] sm:$0xff]
    %v532 = vld [vmem:[#allocation5 + $0x30] sm:$0xff]
    %v533 = vld [vmem:[#allocation5 + $0x38] sm:$0xff]
    %v534 = vld [vmem:[#allocation5 + $0x40] sm:$0xff]
    %v535 = vld [vmem:[#allocation5 + $0x48] sm:$0xff]
    %v536 = vld [vmem:[#allocation5 + $0x50] sm:$0xff]
    %v537 = vld [vmem:[#allocation5 + $0x58] sm:$0xff]
    %v538 = vld [vmem:[#allocation5 + $0x60] sm:$0xff]
    %v539 = vld [vmem:[#allocation5 + $0x68] sm:$0xff]
    %v540 = vld [vmem:[#allocation5 + $0x70] sm:$0xff]
    %v541 = vld [vmem:[#allocation5 + $0x78] sm:$0xff]
    %v542 = vld [vmem:[#allocation5 + $0x80] sm:$0xff]
    %v543 = vld [vmem:[#allocation5 + $0x88] sm:$0xff]
    %v544 = vld [vmem:[#allocation5 + $0x90] sm:$0xff]
    %v545 = vld [vmem:[#allocation5 + $0x98] sm:$0xff]
    %v546 = vld [vmem:[#allocation5 + $0xa0] sm:$0xff]
    %v547 = vld [vmem:[#allocation5 + $0xa8] sm:$0xff]
    %v548 = vld [vmem:[#allocation5 + $0xb0] sm:$0xff]
    %v549 = vld [vmem:[#allocation5 + $0xb8] sm:$0xff]
    %v550 = vld [vmem:[#allocation5 + $0xc0] sm:$0xff]
    %v551 = vld [vmem:[#allocation5 + $0xc8] sm:$0xff]
    %v552 = vld [vmem:[#allocation5 + $0xd0] sm:$0xff]
    %v553 = vld [vmem:[#allocation5 + $0xd8] sm:$0xff]
    %v554 = vld [vmem:[#allocation5 + $0xe0] sm:$0xff]
    %v555 = vld [vmem:[#allocation5 + $0xe8] sm:$0xff]
    %v556 = vld [vmem:[#allocation5 + $0xf0] sm:$0xff]
    %v557 = vld [vmem:[#allocation5 + $0xf8] sm:$0xff]
    %v558 = vld [vmem:[#allocation5 + $0x100] sm:$0xff]
    %v559 = vld [vmem:[#allocation5 + $0x108] sm:$0xff]
    %v560 = vld [vmem:[#allocation5 + $0x110] sm:$0xff]
    %v561 = vld [vmem:[#allocation5 + $0x118] sm:$0xff]
    %v562 = vld [vmem:[#allocation5 + $0x120] sm:$0xff]
    %v563 = vld [vmem:[#allocation5 + $0x128] sm:$0xff]
    %v564 = vld [vmem:[#allocation5 + $0x130] sm:$0xff]
    %v565 = vld [vmem:[#allocation5 + $0x138] sm:$0xff]
    %v566 = vld [vmem:[#allocation5 + $0x140] sm:$0xff]
    %v567 = vld [vmem:[#allocation5 + $0x148] sm:$0xff]
    %v568 = vld [vmem:[#allocation5 + $0x150] sm:$0xff]
    %v569 = vld [vmem:[#allocation5 + $0x158] sm:$0xff]
    %v570 = vld [vmem:[#allocation5 + $0x160] sm:$0xff]
    %v571 = vld [vmem:[#allocation5 + $0x168] sm:$0xff]
    %v572 = vld [vmem:[#allocation5 + $0x170] sm:$0xff]
    %v573 = vld [vmem:[#allocation5 + $0x178] sm:$0xff]
    %v574 = vld [vmem:[#allocation5 + $0x180] sm:$0xff]
    %v575 = vld [vmem:[#allocation5 + $0x188] sm:$0xff]
    %v576 = vld [vmem:[#allocation5 + $0x190] sm:$0xff]
    %v577 = vld [vmem:[#allocation5 + $0x198] sm:$0xff]
    %v578 = vld [vmem:[#allocation5 + $0x1a0] sm:$0xff]
    %v579 = vld [vmem:[#allocation5 + $0x1a8] sm:$0xff]
    %v580 = vld [vmem:[#allocation5 + $0x1b0] sm:$0xff]
    %v581 = vld [vmem:[#allocation5 + $0x1b8] sm:$0xff]
    %v582 = vld [vmem:[#allocation5 + $0x1c0] sm:$0xff]
    %v583 = vld [vmem:[#allocation5 + $0x1c8] sm:$0xff]
    %v584 = vld [vmem:[#allocation5 + $0x1d0] sm:$0xff]
    %v585 = vld [vmem:[#allocation5 + $0x1d8] sm:$0xff]
    %v586 = vld [vmem:[#allocation5 + $0x1e0] sm:$0xff]
    %v587 = vld [vmem:[#allocation5 + $0x1e8] sm:$0xff]
    %v588 = vld [vmem:[#allocation5 + $0x1f0] sm:$0xff]
    %v589 = vld [vmem:[#allocation5 + $0x1f8] sm:$0xff]
    %v590 = vld [vmem:[%s4] sm:$0x3]
    %v592 = vperm.slane %v590, 0
    %v593 = vperm.slane %v590, 1
    %v660 = vunpack.c.l.b16 %v526
    %v661 = vunpack.c.h.b16 %v526
    %v662 = vunpack.c.l.b16 %v527
    %v663 = vunpack.c.h.b16 %v527
    %v664 = vunpack.c.l.b16 %v528
    %v665 = vunpack.c.h.b16 %v528
    %v666 = vunpack.c.l.b16 %v529
    %v667 = vunpack.c.h.b16 %v529
    %v668 = vunpack.c.l.b16 %v530
    %v669 = vunpack.c.h.b16 %v530
    %v670 = vunpack.c.l.b16 %v531
    %v671 = vunpack.c.h.b16 %v531
    %v672 = vunpack.c.l.b16 %v532
    %v673 = vunpack.c.h.b16 %v532
    %v674 = vunpack.c.l.b16 %v533
    %v675 = vunpack.c.h.b16 %v533
    %v676 = vunpack.c.l.b16 %v534
    %v677 = vunpack.c.h.b16 %v534
    %v678 = vunpack.c.l.b16 %v535
    %v679 = vunpack.c.h.b16 %v535
    %v680 = vunpack.c.l.b16 %v536
    %v681 = vunpack.c.h.b16 %v536
    %v682 = vunpack.c.l.b16 %v537
    %v683 = vunpack.c.h.b16 %v537
    %v684 = vunpack.c.l.b16 %v538
    %v685 = vunpack.c.h.b16 %v538
    %v686 = vunpack.c.l.b16 %v539
    %v687 = vunpack.c.h.b16 %v539
    %v688 = vunpack.c.l.b16 %v540
    %v689 = vunpack.c.h.b16 %v540
    %v690 = vunpack.c.l.b16 %v541
    %v691 = vunpack.c.h.b16 %v541
    %v692 = vunpack.c.l.b16 %v542
    %v693 = vunpack.c.h.b16 %v542
    %v694 = vunpack.c.l.b16 %v543
    %v695 = vunpack.c.h.b16 %v543
    %v696 = vunpack.c.l.b16 %v544
    %v697 = vunpack.c.h.b16 %v544
    %v698 = vunpack.c.l.b16 %v545
    %v699 = vunpack.c.h.b16 %v545
    %v700 = vunpack.c.l.b16 %v546
    %v701 = vunpack.c.h.b16 %v546
    %v702 = vunpack.c.l.b16 %v547
    %v703 = vunpack.c.h.b16 %v547
    %v704 = vunpack.c.l.b16 %v548
    %v705 = vunpack.c.h.b16 %v548
    %v706 = vunpack.c.l.b16 %v549
    %v707 = vunpack.c.h.b16 %v549
    %v708 = vunpack.c.l.b16 %v550
    %v709 = vunpack.c.h.b16 %v550
    %v710 = vunpack.c.l.b16 %v551
    %v711 = vunpack.c.h.b16 %v551
    %v712 = vunpack.c.l.b16 %v552
    %v713 = vunpack.c.h.b16 %v552
    %v714 = vunpack.c.l.b16 %v553
    %v715 = vunpack.c.h.b16 %v553
    %v716 = vunpack.c.l.b16 %v554
    %v717 = vunpack.c.h.b16 %v554
    %v718 = vunpack.c.l.b16 %v555
    %v719 = vunpack.c.h.b16 %v555
    %v720 = vunpack.c.l.b16 %v556
    %v721 = vunpack.c.h.b16 %v556
    %v722 = vunpack.c.l.b16 %v557
    %v723 = vunpack.c.h.b16 %v557
    %v724 = vunpack.c.l.b16 %v558
    %v725 = vunpack.c.h.b16 %v558
    %v726 = vunpack.c.l.b16 %v559
    %v727 = vunpack.c.h.b16 %v559
    %v728 = vunpack.c.l.b16 %v560
    %v729 = vunpack.c.h.b16 %v560
    %v730 = vunpack.c.l.b16 %v561
    %v731 = vunpack.c.h.b16 %v561
    %v732 = vunpack.c.l.b16 %v562
    %v733 = vunpack.c.h.b16 %v562
    %v734 = vunpack.c.l.b16 %v563
    %v735 = vunpack.c.h.b16 %v563
    %v736 = vunpack.c.l.b16 %v564
    %v737 = vunpack.c.h.b16 %v564
    %v738 = vunpack.c.l.b16 %v565
    %v739 = vunpack.c.h.b16 %v565
    %v740 = vunpack.c.l.b16 %v566
    %v741 = vunpack.c.h.b16 %v566
    %v742 = vunpack.c.l.b16 %v567
    %v743 = vunpack.c.h.b16 %v567
    %v744 = vunpack.c.l.b16 %v568
    %v745 = vunpack.c.h.b16 %v568
    %v746 = vunpack.c.l.b16 %v569
    %v747 = vunpack.c.h.b16 %v569
    %v748 = vunpack.c.l.b16 %v570
    %v749 = vunpack.c.h.b16 %v570
    %v750 = vunpack.c.l.b16 %v571
    %v751 = vunpack.c.h.b16 %v571
    %v752 = vunpack.c.l.b16 %v572
    %v753 = vunpack.c.h.b16 %v572
    %v754 = vunpack.c.l.b16 %v573
    %v755 = vunpack.c.h.b16 %v573
    %v756 = vunpack.c.l.b16 %v574
    %v757 = vunpack.c.h.b16 %v574
    %v758 = vunpack.c.l.b16 %v575
    %v759 = vunpack.c.h.b16 %v575
    %v760 = vunpack.c.l.b16 %v576
    %v761 = vunpack.c.h.b16 %v576
    %v762 = vunpack.c.l.b16 %v577
    %v763 = vunpack.c.h.b16 %v577
    %v764 = vunpack.c.l.b16 %v578
    %v765 = vunpack.c.h.b16 %v578
    %v766 = vunpack.c.l.b16 %v579
    %v767 = vunpack.c.h.b16 %v579
    %v768 = vunpack.c.l.b16 %v580
    %v769 = vunpack.c.h.b16 %v580
    %v770 = vunpack.c.l.b16 %v581
    %v771 = vunpack.c.h.b16 %v581
    %v772 = vunpack.c.l.b16 %v582
    %v773 = vunpack.c.h.b16 %v582
    %v774 = vunpack.c.l.b16 %v583
    %v775 = vunpack.c.h.b16 %v583
    %v776 = vunpack.c.l.b16 %v584
    %v777 = vunpack.c.h.b16 %v584
    %v778 = vunpack.c.l.b16 %v585
    %v779 = vunpack.c.h.b16 %v585
    %v780 = vunpack.c.l.b16 %v586
    %v781 = vunpack.c.h.b16 %v586
    %v782 = vunpack.c.l.b16 %v587
    %v783 = vunpack.c.h.b16 %v587
    %v784 = vunpack.c.l.b16 %v588
    %v785 = vunpack.c.h.b16 %v588
    %v786 = vunpack.c.l.b16 %v589
    %v787 = vunpack.c.h.b16 %v589
    %v788 = vpack.c.b16 %v662, %v660
    %v789 = vpack.c.b16 %v663, %v661
    %v790 = vpack.c.b16 %v666, %v664
    %v791 = vpack.c.b16 %v667, %v665
    %v792 = vpack.c.b16 %v670, %v668
    %v793 = vpack.c.b16 %v671, %v669
    %v794 = vpack.c.b16 %v674, %v672
    %v795 = vpack.c.b16 %v675, %v673
    %v796 = vpack.c.b16 %v678, %v676
    %v797 = vpack.c.b16 %v679, %v677
    %v798 = vpack.c.b16 %v682, %v680
    %v799 = vpack.c.b16 %v683, %v681
    %v800 = vpack.c.b16 %v686, %v684
    %v801 = vpack.c.b16 %v687, %v685
    %v802 = vpack.c.b16 %v690, %v688
    %v803 = vpack.c.b16 %v691, %v689
    %v804 = vpack.c.b16 %v694, %v692
    %v805 = vpack.c.b16 %v695, %v693
    %v806 = vpack.c.b16 %v698, %v696
    %v807 = vpack.c.b16 %v699, %v697
    %v808 = vpack.c.b16 %v702, %v700
    %v809 = vpack.c.b16 %v703, %v701
    %v810 = vpack.c.b16 %v706, %v704
    %v811 = vpack.c.b16 %v707, %v705
    %v812 = vpack.c.b16 %v710, %v708
    %v813 = vpack.c.b16 %v711, %v709
    %v814 = vpack.c.b16 %v714, %v712
    %v815 = vpack.c.b16 %v715, %v713
    %v816 = vpack.c.b16 %v718, %v716
    %v817 = vpack.c.b16 %v719, %v717
    %v818 = vpack.c.b16 %v722, %v720
    %v819 = vpack.c.b16 %v723, %v721
    %v820 = vpack.c.b16 %v726, %v724
    %v821 = vpack.c.b16 %v727, %v725
    %v822 = vpack.c.b16 %v730, %v728
    %v823 = vpack.c.b16 %v731, %v729
    %v824 = vpack.c.b16 %v734, %v732
    %v825 = vpack.c.b16 %v735, %v733
    %v826 = vpack.c.b16 %v738, %v736
    %v827 = vpack.c.b16 %v739, %v737
    %v828 = vpack.c.b16 %v742, %v740
    %v829 = vpack.c.b16 %v743, %v741
    %v830 = vpack.c.b16 %v746, %v744
    %v831 = vpack.c.b16 %v747, %v745
    %v832 = vpack.c.b16 %v750, %v748
    %v833 = vpack.c.b16 %v751, %v749
    %v834 = vpack.c.b16 %v754, %v752
    %v835 = vpack.c.b16 %v755, %v753
    %v836 = vpack.c.b16 %v758, %v756
    %v837 = vpack.c.b16 %v759, %v757
    %v838 = vpack.c.b16 %v762, %v760
    %v839 = vpack.c.b16 %v763, %v761
    %v840 = vpack.c.b16 %v766, %v764
    %v841 = vpack.c.b16 %v767, %v765
    %v842 = vpack.c.b16 %v770, %v768
    %v843 = vpack.c.b16 %v771, %v769
    %v844 = vpack.c.b16 %v774, %v772
    %v845 = vpack.c.b16 %v775, %v773
    %v846 = vpack.c.b16 %v778, %v776
    %v847 = vpack.c.b16 %v779, %v777
    %v848 = vpack.c.b16 %v782, %v780
    %v849 = vpack.c.b16 %v783, %v781
    %v850 = vpack.c.b16 %v786, %v784
    %v851 = vpack.c.b16 %v787, %v785
    %916 = vmatpush.bf16.msra.mxu0 %v802
    %917 = vmatpush.bf16.msra.mxu0 %v800
    %918 = vmatpush.bf16.msra.mxu0 %v798
    %919 = vmatpush.bf16.msra.mxu0 %v796
    %920 = vmatpush.bf16.msra.mxu0 %v794
    %921 = vmatpush.bf16.msra.mxu0 %v792
    %922 = vmatpush.bf16.msra.mxu0 %v790
    %923 = vmatpush.bf16.msra.mxu0 %v788
    %924 = vmatmul.bf16.gmra.mxu0 %v494
    %v925 = vpop.f32.mrf.mxu0
    %v926 = vadd.f32 %v592, %v925
    %v927 = vpop.f32.mrf.mxu0
    %v928 = vadd.f32 %v592, %v927
    %929 = vmatmul.bf16.gmra.mxu0 %v498
    %v930 = vpop.f32.mrf.mxu0
    %v931 = vadd.f32 %v592, %v930
    %v932 = vpop.f32.mrf.mxu0
    %v933 = vadd.f32 %v592, %v932
    %934 = vmatmul.bf16.gmra.mxu0 %v502
    %v935 = vpop.f32.mrf.mxu0
    %v936 = vadd.f32 %v592, %v935
    %v937 = vpop.f32.mrf.mxu0
    %v938 = vadd.f32 %v592, %v937
    %939 = vmatmul.bf16.gmra.mxu0 %v506
    %v940 = vpop.f32.mrf.mxu0
    %v941 = vadd.f32 %v592, %v940
    %v942 = vpop.f32.mrf.mxu0
    %v943 = vadd.f32 %v592, %v942
    %944 = vmatmul.bf16.gmra.mxu0 %v510
    %v945 = vpop.f32.mrf.mxu0
    %v946 = vadd.f32 %v592, %v945
    %v947 = vpop.f32.mrf.mxu0
    %v948 = vadd.f32 %v592, %v947
    %949 = vmatmul.bf16.gmra.mxu0 %v514
    %v950 = vpop.f32.mrf.mxu0
    %v951 = vadd.f32 %v592, %v950
    %v952 = vpop.f32.mrf.mxu0
    %v953 = vadd.f32 %v592, %v952
    %954 = vmatmul.bf16.gmra.mxu0 %v518
    %v955 = vpop.f32.mrf.mxu0
    %v956 = vadd.f32 %v592, %v955
    %v957 = vpop.f32.mrf.mxu0
    %v958 = vadd.f32 %v592, %v957
    %959 = vmatmul.bf16.gmra.mxu0 %v522
    %v960 = vpop.f32.mrf.mxu0
    %v961 = vadd.f32 %v592, %v960
    %v962 = vpop.f32.mrf.mxu0
    %v963 = vadd.f32 %v592, %v962
    %964 = vdwg.mxu0
    %965 = vmatpush.bf16.msra.mxu0 %v818
    %966 = vmatpush.bf16.msra.mxu0 %v816
    %967 = vmatpush.bf16.msra.mxu0 %v814
    %968 = vmatpush.bf16.msra.mxu0 %v812
    %969 = vmatpush.bf16.msra.mxu0 %v810
    %970 = vmatpush.bf16.msra.mxu0 %v808
    %971 = vmatpush.bf16.msra.mxu0 %v806
    %972 = vmatpush.bf16.msra.mxu0 %v804
    %973 = vmatmul.bf16.gmra.mxu0 %v495
    %v974 = vpop.f32.mrf.mxu0
    %v975 = vadd.f32 %v926, %v974
    %v976 = vpop.f32.mrf.mxu0
    %v977 = vadd.f32 %v928, %v976
    %978 = vmatmul.bf16.gmra.mxu0 %v499
    %v979 = vpop.f32.mrf.mxu0
    %v980 = vadd.f32 %v931, %v979
    %v981 = vpop.f32.mrf.mxu0
    %v982 = vadd.f32 %v933, %v981
    %983 = vmatmul.bf16.gmra.mxu0 %v503
    %v984 = vpop.f32.mrf.mxu0
    %v985 = vadd.f32 %v936, %v984
    %v986 = vpop.f32.mrf.mxu0
    %v987 = vadd.f32 %v938, %v986
    %988 = vmatmul.bf16.gmra.mxu0 %v507
    %v989 = vpop.f32.mrf.mxu0
    %v990 = vadd.f32 %v941, %v989
    %v991 = vpop.f32.mrf.mxu0
    %v992 = vadd.f32 %v943, %v991
    %993 = vmatmul.bf16.gmra.mxu0 %v511
    %v994 = vpop.f32.mrf.mxu0
    %v995 = vadd.f32 %v946, %v994
    %v996 = vpop.f32.mrf.mxu0
    %v997 = vadd.f32 %v948, %v996
    %998 = vmatmul.bf16.gmra.mxu0 %v515
    %v999 = vpop.f32.mrf.mxu0
    %v1000 = vadd.f32 %v951, %v999
    %v1001 = vpop.f32.mrf.mxu0
    %v1002 = vadd.f32 %v953, %v1001
    %1003 = vmatmul.bf16.gmra.mxu0 %v519
    %v1004 = vpop.f32.mrf.mxu0
    %v1005 = vadd.f32 %v956, %v1004
    %v1006 = vpop.f32.mrf.mxu0
    %v1007 = vadd.f32 %v958, %v1006
    %1008 = vmatmul.bf16.gmra.mxu0 %v523
    %v1009 = vpop.f32.mrf.mxu0
    %v1010 = vadd.f32 %v961, %v1009
    %v1011 = vpop.f32.mrf.mxu0
    %v1012 = vadd.f32 %v963, %v1011
    %1013 = vdwg.mxu0
    %1014 = vmatpush.bf16.msra.mxu0 %v834
    %1015 = vmatpush.bf16.msra.mxu0 %v832
    %1016 = vmatpush.bf16.msra.mxu0 %v830
    %1017 = vmatpush.bf16.msra.mxu0 %v828
    %1018 = vmatpush.bf16.msra.mxu0 %v826
    %1019 = vmatpush.bf16.msra.mxu0 %v824
    %1020 = vmatpush.bf16.msra.mxu0 %v822
    %1021 = vmatpush.bf16.msra.mxu0 %v820
    %1022 = vmatmul.bf16.gmra.mxu0 %v496
    %v1023 = vpop.f32.mrf.mxu0
    %v1024 = vadd.f32 %v975, %v1023
    %v1025 = vpop.f32.mrf.mxu0
    %v1026 = vadd.f32 %v977, %v1025
    %1027 = vmatmul.bf16.gmra.mxu0 %v500
    %v1028 = vpop.f32.mrf.mxu0
    %v1029 = vadd.f32 %v980, %v1028
    %v1030 = vpop.f32.mrf.mxu0
    %v1031 = vadd.f32 %v982, %v1030
    %1032 = vmatmul.bf16.gmra.mxu0 %v504
    %v1033 = vpop.f32.mrf.mxu0
    %v1034 = vadd.f32 %v985, %v1033
    %v1035 = vpop.f32.mrf.mxu0
    %v1036 = vadd.f32 %v987, %v1035
    %1037 = vmatmul.bf16.gmra.mxu0 %v508
    %v1038 = vpop.f32.mrf.mxu0
    %v1039 = vadd.f32 %v990, %v1038
    %v1040 = vpop.f32.mrf.mxu0
    %v1041 = vadd.f32 %v992, %v1040
    %1042 = vmatmul.bf16.gmra.mxu0 %v512
    %v1043 = vpop.f32.mrf.mxu0
    %v1044 = vadd.f32 %v995, %v1043
    %v1045 = vpop.f32.mrf.mxu0
    %v1046 = vadd.f32 %v997, %v1045
    %1047 = vmatmul.bf16.gmra.mxu0 %v516
    %v1048 = vpop.f32.mrf.mxu0
    %v1049 = vadd.f32 %v1000, %v1048
    %v1050 = vpop.f32.mrf.mxu0
    %v1051 = vadd.f32 %v1002, %v1050
    %1052 = vmatmul.bf16.gmra.mxu0 %v520
    %v1053 = vpop.f32.mrf.mxu0
    %v1054 = vadd.f32 %v1005, %v1053
    %v1055 = vpop.f32.mrf.mxu0
    %v1056 = vadd.f32 %v1007, %v1055
    %1057 = vmatmul.bf16.gmra.mxu0 %v524
    %v1058 = vpop.f32.mrf.mxu0
    %v1059 = vadd.f32 %v1010, %v1058
    %v1060 = vpop.f32.mrf.mxu0
    %v1061 = vadd.f32 %v1012, %v1060
    %1062 = vdwg.mxu0
    %1063 = vmatpush.bf16.msra.mxu0 %v850
    %1064 = vmatpush.bf16.msra.mxu0 %v848
    %1065 = vmatpush.bf16.msra.mxu0 %v846
    %1066 = vmatpush.bf16.msra.mxu0 %v844
    %1067 = vmatpush.bf16.msra.mxu0 %v842
    %1068 = vmatpush.bf16.msra.mxu0 %v840
    %1069 = vmatpush.bf16.msra.mxu0 %v838
    %1070 = vmatpush.bf16.msra.mxu0 %v836
    %1071 = vmatmul.bf16.gmra.mxu0 %v497
    %v1072 = vpop.f32.mrf.mxu0
    %v1073 = vadd.f32 %v1024, %v1072
    %v1074 = vpop.f32.mrf.mxu0
    %v1075 = vadd.f32 %v1026, %v1074
    %1076 = vmatmul.bf16.gmra.mxu0 %v501
    %v1077 = vpop.f32.mrf.mxu0
    %v1078 = vadd.f32 %v1029, %v1077
    %v1079 = vpop.f32.mrf.mxu0
    %v1080 = vadd.f32 %v1031, %v1079
    %1081 = vmatmul.bf16.gmra.mxu0 %v505
    %v1082 = vpop.f32.mrf.mxu0
    %v1083 = vadd.f32 %v1034, %v1082
    %v1084 = vpop.f32.mrf.mxu0
    %v1085 = vadd.f32 %v1036, %v1084
    %1086 = vmatmul.bf16.gmra.mxu0 %v509
    %v1087 = vpop.f32.mrf.mxu0
    %v1088 = vadd.f32 %v1039, %v1087
    %v1089 = vpop.f32.mrf.mxu0
    %v1090 = vadd.f32 %v1041, %v1089
    %1091 = vmatmul.bf16.gmra.mxu0 %v513
    %v1092 = vpop.f32.mrf.mxu0
    %v1093 = vadd.f32 %v1044, %v1092
    %v1094 = vpop.f32.mrf.mxu0
    %v1095 = vadd.f32 %v1046, %v1094
    %1096 = vmatmul.bf16.gmra.mxu0 %v517
    %v1097 = vpop.f32.mrf.mxu0
    %v1098 = vadd.f32 %v1049, %v1097
    %v1099 = vpop.f32.mrf.mxu0
    %v1100 = vadd.f32 %v1051, %v1099
    %1101 = vmatmul.bf16.gmra.mxu0 %v521
    %v1102 = vpop.f32.mrf.mxu0
    %v1103 = vadd.f32 %v1054, %v1102
    %v1104 = vpop.f32.mrf.mxu0
    %v1105 = vadd.f32 %v1056, %v1104
    %1106 = vmatmul.bf16.gmra.mxu0 %v525
    %v1107 = vpop.f32.mrf.mxu0
    %v1108 = vadd.f32 %v1059, %v1107
    %v1109 = vpop.f32.mrf.mxu0
    %v1110 = vadd.f32 %v1061, %v1109
    %1111 = vdwg.mxu0
    %1112 = vmatpush.bf16.msra.mxu0 %v803
    %1113 = vmatpush.bf16.msra.mxu0 %v801
    %1114 = vmatpush.bf16.msra.mxu0 %v799
    %1115 = vmatpush.bf16.msra.mxu0 %v797
    %1116 = vmatpush.bf16.msra.mxu0 %v795
    %1117 = vmatpush.bf16.msra.mxu0 %v793
    %1118 = vmatpush.bf16.msra.mxu0 %v791
    %1119 = vmatpush.bf16.msra.mxu0 %v789
    %1120 = vmatmul.bf16.gmra.mxu0 %v494
    %v1121 = vpop.f32.mrf.mxu0
    %v1122 = vadd.f32 %v593, %v1121
    %v1123 = vpop.f32.mrf.mxu0
    %v1124 = vadd.f32 %v593, %v1123
    %1125 = vmatmul.bf16.gmra.mxu0 %v498
    %v1126 = vpop.f32.mrf.mxu0
    %v1127 = vadd.f32 %v593, %v1126
    %v1128 = vpop.f32.mrf.mxu0
    %v1129 = vadd.f32 %v593, %v1128
    %1130 = vmatmul.bf16.gmra.mxu0 %v502
    %v1131 = vpop.f32.mrf.mxu0
    %v1132 = vadd.f32 %v593, %v1131
    %v1133 = vpop.f32.mrf.mxu0
    %v1134 = vadd.f32 %v593, %v1133
    %1135 = vmatmul.bf16.gmra.mxu0 %v506
    %v1136 = vpop.f32.mrf.mxu0
    %v1137 = vadd.f32 %v593, %v1136
    %v1138 = vpop.f32.mrf.mxu0
    %v1139 = vadd.f32 %v593, %v1138
    %1140 = vmatmul.bf16.gmra.mxu0 %v510
    %v1141 = vpop.f32.mrf.mxu0
    %v1142 = vadd.f32 %v593, %v1141
    %v1143 = vpop.f32.mrf.mxu0
    %v1144 = vadd.f32 %v593, %v1143
    %1145 = vmatmul.bf16.gmra.mxu0 %v514
    %v1146 = vpop.f32.mrf.mxu0
    %v1147 = vadd.f32 %v593, %v1146
    %v1148 = vpop.f32.mrf.mxu0
    %v1149 = vadd.f32 %v593, %v1148
    %1150 = vmatmul.bf16.gmra.mxu0 %v518
    %v1151 = vpop.f32.mrf.mxu0
    %v1152 = vadd.f32 %v593, %v1151
    %v1153 = vpop.f32.mrf.mxu0
    %v1154 = vadd.f32 %v593, %v1153
    %1155 = vmatmul.bf16.gmra.mxu0 %v522
    %v1156 = vpop.f32.mrf.mxu0
    %v1157 = vadd.f32 %v593, %v1156
    %v1158 = vpop.f32.mrf.mxu0
    %v1159 = vadd.f32 %v593, %v1158
    %1160 = vdwg.mxu0
    %1161 = vmatpush.bf16.msra.mxu0 %v819
    %1162 = vmatpush.bf16.msra.mxu0 %v817
    %1163 = vmatpush.bf16.msra.mxu0 %v815
    %1164 = vmatpush.bf16.msra.mxu0 %v813
    %1165 = vmatpush.bf16.msra.mxu0 %v811
    %1166 = vmatpush.bf16.msra.mxu0 %v809
    %1167 = vmatpush.bf16.msra.mxu0 %v807
    %1168 = vmatpush.bf16.msra.mxu0 %v805
    %1169 = vmatmul.bf16.gmra.mxu0 %v495
    %v1170 = vpop.f32.mrf.mxu0
    %v1171 = vadd.f32 %v1122, %v1170
    %v1172 = vpop.f32.mrf.mxu0
    %v1173 = vadd.f32 %v1124, %v1172
    %1174 = vmatmul.bf16.gmra.mxu0 %v499
    %v1175 = vpop.f32.mrf.mxu0
    %v1176 = vadd.f32 %v1127, %v1175
    %v1177 = vpop.f32.mrf.mxu0
    %v1178 = vadd.f32 %v1129, %v1177
    %1179 = vmatmul.bf16.gmra.mxu0 %v503
    %v1180 = vpop.f32.mrf.mxu0
    %v1181 = vadd.f32 %v1132, %v1180
    %v1182 = vpop.f32.mrf.mxu0
    %v1183 = vadd.f32 %v1134, %v1182
    %1184 = vmatmul.bf16.gmra.mxu0 %v507
    %v1185 = vpop.f32.mrf.mxu0
    %v1186 = vadd.f32 %v1137, %v1185
    %v1187 = vpop.f32.mrf.mxu0
    %v1188 = vadd.f32 %v1139, %v1187
    %1189 = vmatmul.bf16.gmra.mxu0 %v511
    %v1190 = vpop.f32.mrf.mxu0
    %v1191 = vadd.f32 %v1142, %v1190
    %v1192 = vpop.f32.mrf.mxu0
    %v1193 = vadd.f32 %v1144, %v1192
    %1194 = vmatmul.bf16.gmra.mxu0 %v515
    %v1195 = vpop.f32.mrf.mxu0
    %v1196 = vadd.f32 %v1147, %v1195
    %v1197 = vpop.f32.mrf.mxu0
    %v1198 = vadd.f32 %v1149, %v1197
    %1199 = vmatmul.bf16.gmra.mxu0 %v519
    %v1200 = vpop.f32.mrf.mxu0
    %v1201 = vadd.f32 %v1152, %v1200
    %v1202 = vpop.f32.mrf.mxu0
    %v1203 = vadd.f32 %v1154, %v1202
    %1204 = vmatmul.bf16.gmra.mxu0 %v523
    %v1205 = vpop.f32.mrf.mxu0
    %v1206 = vadd.f32 %v1157, %v1205
    %v1207 = vpop.f32.mrf.mxu0
    %v1208 = vadd.f32 %v1159, %v1207
    %1209 = vdwg.mxu0
    %1210 = vmatpush.bf16.msra.mxu0 %v835
    %1211 = vmatpush.bf16.msra.mxu0 %v833
    %1212 = vmatpush.bf16.msra.mxu0 %v831
    %1213 = vmatpush.bf16.msra.mxu0 %v829
    %1214 = vmatpush.bf16.msra.mxu0 %v827
    %1215 = vmatpush.bf16.msra.mxu0 %v825
    %1216 = vmatpush.bf16.msra.mxu0 %v823
    %1217 = vmatpush.bf16.msra.mxu0 %v821
    %1218 = vmatmul.bf16.gmra.mxu0 %v496
    %v1219 = vpop.f32.mrf.mxu0
    %v1220 = vadd.f32 %v1171, %v1219
    %v1221 = vpop.f32.mrf.mxu0
    %v1222 = vadd.f32 %v1173, %v1221
    %1223 = vmatmul.bf16.gmra.mxu0 %v500
    %v1224 = vpop.f32.mrf.mxu0
    %v1225 = vadd.f32 %v1176, %v1224
    %v1226 = vpop.f32.mrf.mxu0
    %v1227 = vadd.f32 %v1178, %v1226
    %1228 = vmatmul.bf16.gmra.mxu0 %v504
    %v1229 = vpop.f32.mrf.mxu0
    %v1230 = vadd.f32 %v1181, %v1229
    %v1231 = vpop.f32.mrf.mxu0
    %v1232 = vadd.f32 %v1183, %v1231
    %1233 = vmatmul.bf16.gmra.mxu0 %v508
    %v1234 = vpop.f32.mrf.mxu0
    %v1235 = vadd.f32 %v1186, %v1234
    %v1236 = vpop.f32.mrf.mxu0
    %v1237 = vadd.f32 %v1188, %v1236
    %1238 = vmatmul.bf16.gmra.mxu0 %v512
    %v1239 = vpop.f32.mrf.mxu0
    %v1240 = vadd.f32 %v1191, %v1239
    %v1241 = vpop.f32.mrf.mxu0
    %v1242 = vadd.f32 %v1193, %v1241
    %1243 = vmatmul.bf16.gmra.mxu0 %v516
    %v1244 = vpop.f32.mrf.mxu0
    %v1245 = vadd.f32 %v1196, %v1244
    %v1246 = vpop.f32.mrf.mxu0
    %v1247 = vadd.f32 %v1198, %v1246
    %1248 = vmatmul.bf16.gmra.mxu0 %v520
    %v1249 = vpop.f32.mrf.mxu0
    %v1250 = vadd.f32 %v1201, %v1249
    %v1251 = vpop.f32.mrf.mxu0
    %v1252 = vadd.f32 %v1203, %v1251
    %1253 = vmatmul.bf16.gmra.mxu0 %v524
    %v1254 = vpop.f32.mrf.mxu0
    %v1255 = vadd.f32 %v1206, %v1254
    %v1256 = vpop.f32.mrf.mxu0
    %v1257 = vadd.f32 %v1208, %v1256
    %1258 = vdwg.mxu0
    %1259 = vmatpush.bf16.msra.mxu0 %v851
    %1260 = vmatpush.bf16.msra.mxu0 %v849
    %1261 = vmatpush.bf16.msra.mxu0 %v847
    %1262 = vmatpush.bf16.msra.mxu0 %v845
    %1263 = vmatpush.bf16.msra.mxu0 %v843
    %1264 = vmatpush.bf16.msra.mxu0 %v841
    %1265 = vmatpush.bf16.msra.mxu0 %v839
    %1266 = vmatpush.bf16.msra.mxu0 %v837
    %1267 = vmatmul.bf16.gmra.mxu0 %v497
    %v1268 = vpop.f32.mrf.mxu0
    %v1269 = vadd.f32 %v1220, %v1268
    %v1270 = vpop.f32.mrf.mxu0
    %v1271 = vadd.f32 %v1222, %v1270
    %1272 = vmatmul.bf16.gmra.mxu0 %v501
    %v1273 = vpop.f32.mrf.mxu0
    %v1274 = vadd.f32 %v1225, %v1273
    %v1275 = vpop.f32.mrf.mxu0
    %v1276 = vadd.f32 %v1227, %v1275
    %1277 = vmatmul.bf16.gmra.mxu0 %v505
    %v1278 = vpop.f32.mrf.mxu0
    %v1279 = vadd.f32 %v1230, %v1278
    %v1280 = vpop.f32.mrf.mxu0
    %v1281 = vadd.f32 %v1232, %v1280
    %1282 = vmatmul.bf16.gmra.mxu0 %v509
    %v1283 = vpop.f32.mrf.mxu0
    %v1284 = vadd.f32 %v1235, %v1283
    %v1285 = vpop.f32.mrf.mxu0
    %v1286 = vadd.f32 %v1237, %v1285
    %1287 = vmatmul.bf16.gmra.mxu0 %v513
    %v1288 = vpop.f32.mrf.mxu0
    %v1289 = vadd.f32 %v1240, %v1288
    %v1290 = vpop.f32.mrf.mxu0
    %v1291 = vadd.f32 %v1242, %v1290
    %1292 = vmatmul.bf16.gmra.mxu0 %v517
    %v1293 = vpop.f32.mrf.mxu0
    %v1294 = vadd.f32 %v1245, %v1293
    %v1295 = vpop.f32.mrf.mxu0
    %v1296 = vadd.f32 %v1247, %v1295
    %1297 = vmatmul.bf16.gmra.mxu0 %v521
    %v1298 = vpop.f32.mrf.mxu0
    %v1299 = vadd.f32 %v1250, %v1298
    %v1300 = vpop.f32.mrf.mxu0
    %v1301 = vadd.f32 %v1252, %v1300
    %1302 = vmatmul.bf16.gmra.mxu0 %v525
    %v1303 = vpop.f32.mrf.mxu0
    %v1304 = vadd.f32 %v1255, %v1303
    %v1305 = vpop.f32.mrf.mxu0
    %v1306 = vadd.f32 %v1257, %v1305
    %1307 = vdwg.mxu0
    %v1308 = vmax.f32 %v1073, 0.0
    %v1309 = vmax.f32 %v1269, 0.0
    %v1310 = vmax.f32 %v1075, 0.0
    %v1311 = vmax.f32 %v1271, 0.0
    %v1312 = vmax.f32 %v1078, 0.0
    %v1313 = vmax.f32 %v1274, 0.0
    %v1314 = vmax.f32 %v1080, 0.0
    %v1315 = vmax.f32 %v1276, 0.0
    %v1316 = vmax.f32 %v1083, 0.0
    %v1317 = vmax.f32 %v1279, 0.0
    %v1318 = vmax.f32 %v1085, 0.0
    %v1319 = vmax.f32 %v1281, 0.0
    %v1320 = vmax.f32 %v1088, 0.0
    %v1321 = vmax.f32 %v1284, 0.0
    %v1322 = vmax.f32 %v1090, 0.0
    %v1323 = vmax.f32 %v1286, 0.0
    %v1324 = vmax.f32 %v1093, 0.0
    %v1325 = vmax.f32 %v1289, 0.0
    %v1326 = vmax.f32 %v1095, 0.0
    %v1327 = vmax.f32 %v1291, 0.0
    %v1328 = vmax.f32 %v1098, 0.0
    %v1329 = vmax.f32 %v1294, 0.0
    %v1330 = vmax.f32 %v1100, 0.0
    %v1331 = vmax.f32 %v1296, 0.0
    %v1332 = vmax.f32 %v1103, 0.0
    %v1333 = vmax.f32 %v1299, 0.0
    %v1334 = vmax.f32 %v1105, 0.0
    %v1335 = vmax.f32 %v1301, 0.0
    %v1336 = vmax.f32 %v1108, 0.0
    %v1337 = vmax.f32 %v1304, 0.0
    %v1338 = vmax.f32 %v1110, 0.0
    %v1339 = vmax.f32 %v1306, 0.0
    %v1340 = vpack.c.bf16 %v1310, %v1308
    %v1341 = vpack.c.bf16 %v1311, %v1309
    %v1342 = vpack.c.bf16 %v1314, %v1312
    %v1343 = vpack.c.bf16 %v1315, %v1313
    %v1344 = vpack.c.bf16 %v1318, %v1316
    %v1345 = vpack.c.bf16 %v1319, %v1317
    %v1346 = vpack.c.bf16 %v1322, %v1320
    %v1347 = vpack.c.bf16 %v1323, %v1321
    %v1348 = vpack.c.bf16 %v1326, %v1324
    %v1349 = vpack.c.bf16 %v1327, %v1325
    %v1350 = vpack.c.bf16 %v1330, %v1328
    %v1351 = vpack.c.bf16 %v1331, %v1329
    %v1352 = vpack.c.bf16 %v1334, %v1332
    %v1353 = vpack.c.bf16 %v1335, %v1333
    %v1354 = vpack.c.bf16 %v1338, %v1336
    %v1355 = vpack.c.bf16 %v1339, %v1337
    %v1356 = vld [vmem:[#allocation7] sm:$0xf]
    %v1357 = vld [vmem:[#allocation7 + $0x4] sm:$0xf]
    %v1358 = vld [vmem:[#allocation7 + $0x8] sm:$0xf]
    %v1359 = vld [vmem:[#allocation7 + $0xc] sm:$0xf]
    %v1360 = vld [vmem:[#allocation7 + $0x10] sm:$0xf]
    %v1361 = vld [vmem:[#allocation7 + $0x14] sm:$0xf]
    %v1362 = vld [vmem:[#allocation7 + $0x18] sm:$0xf]
    %v1363 = vld [vmem:[#allocation7 + $0x1c] sm:$0xf]
    %v1364 = vld [vmem:[#allocation7 + $0x20] sm:$0xf]
    %v1365 = vld [vmem:[#allocation7 + $0x24] sm:$0xf]
    %v1366 = vld [vmem:[#allocation7 + $0x28] sm:$0xf]
    %v1367 = vld [vmem:[#allocation7 + $0x2c] sm:$0xf]
    %v1368 = vld [vmem:[#allocation7 + $0x30] sm:$0xf]
    %v1369 = vld [vmem:[#allocation7 + $0x34] sm:$0xf]
    %v1370 = vld [vmem:[#allocation7 + $0x38] sm:$0xf]
    %v1371 = vld [vmem:[#allocation7 + $0x3c] sm:$0xf]
    %v1372 = vld [vmem:[#allocation7 + $0x40] sm:$0xf]
    %v1373 = vld [vmem:[#allocation7 + $0x44] sm:$0xf]
    %v1374 = vld [vmem:[#allocation7 + $0x48] sm:$0xf]
    %v1375 = vld [vmem:[#allocation7 + $0x4c] sm:$0xf]
    %v1376 = vld [vmem:[#allocation7 + $0x50] sm:$0xf]
    %v1377 = vld [vmem:[#allocation7 + $0x54] sm:$0xf]
    %v1378 = vld [vmem:[#allocation7 + $0x58] sm:$0xf]
    %v1379 = vld [vmem:[#allocation7 + $0x5c] sm:$0xf]
    %v1380 = vld [vmem:[#allocation7 + $0x60] sm:$0xf]
    %v1381 = vld [vmem:[#allocation7 + $0x64] sm:$0xf]
    %v1382 = vld [vmem:[#allocation7 + $0x68] sm:$0xf]
    %v1383 = vld [vmem:[#allocation7 + $0x6c] sm:$0xf]
    %v1384 = vld [vmem:[#allocation7 + $0x70] sm:$0xf]
    %v1385 = vld [vmem:[#allocation7 + $0x74] sm:$0xf]
    %v1386 = vld [vmem:[#allocation7 + $0x78] sm:$0xf]
    %v1387 = vld [vmem:[#allocation7 + $0x7c] sm:$0xf]
    %v1388 = vld [vmem:[%s6] sm:$0x1]
    %v1390 = vperm.slane %v1388, 0
    %v1424 = vunpack.c.l.b16 %v1356
    %v1425 = vunpack.c.l.b16 %v1357
    %v1426 = vunpack.c.l.b16 %v1358
    %v1427 = vunpack.c.l.b16 %v1359
    %v1428 = vunpack.c.l.b16 %v1360
    %v1429 = vunpack.c.l.b16 %v1361
    %v1430 = vunpack.c.l.b16 %v1362
    %v1431 = vunpack.c.l.b16 %v1363
    %v1432 = vunpack.c.l.b16 %v1364
    %v1433 = vunpack.c.l.b16 %v1365
    %v1434 = vunpack.c.l.b16 %v1366
    %v1435 = vunpack.c.l.b16 %v1367
    %v1436 = vunpack.c.l.b16 %v1368
    %v1437 = vunpack.c.l.b16 %v1369
    %v1438 = vunpack.c.l.b16 %v1370
    %v1439 = vunpack.c.l.b16 %v1371
    %v1440 = vunpack.c.l.b16 %v1372
    %v1441 = vunpack.c.l.b16 %v1373
    %v1442 = vunpack.c.l.b16 %v1374
    %v1443 = vunpack.c.l.b16 %v1375
    %v1444 = vunpack.c.l.b16 %v1376
    %v1445 = vunpack.c.l.b16 %v1377
    %v1446 = vunpack.c.l.b16 %v1378
    %v1447 = vunpack.c.l.b16 %v1379
    %v1448 = vunpack.c.l.b16 %v1380
    %v1449 = vunpack.c.l.b16 %v1381
    %v1450 = vunpack.c.l.b16 %v1382
    %v1451 = vunpack.c.l.b16 %v1383
    %v1452 = vunpack.c.l.b16 %v1384
    %v1453 = vunpack.c.l.b16 %v1385
    %v1454 = vunpack.c.l.b16 %v1386
    %v1455 = vunpack.c.l.b16 %v1387
    %v1456 = vpack.c.b16 %v1425, %v1424
    %v1457 = vpack.c.b16 %v1427, %v1426
    %v1458 = vpack.c.b16 %v1429, %v1428
    %v1459 = vpack.c.b16 %v1431, %v1430
    %v1460 = vpack.c.b16 %v1433, %v1432
    %v1461 = vpack.c.b16 %v1435, %v1434
    %v1462 = vpack.c.b16 %v1437, %v1436
    %v1463 = vpack.c.b16 %v1439, %v1438
    %v1464 = vpack.c.b16 %v1441, %v1440
    %v1465 = vpack.c.b16 %v1443, %v1442
    %v1466 = vpack.c.b16 %v1445, %v1444
    %v1467 = vpack.c.b16 %v1447, %v1446
    %v1468 = vpack.c.b16 %v1449, %v1448
    %v1469 = vpack.c.b16 %v1451, %v1450
    %v1470 = vpack.c.b16 %v1453, %v1452
    %v1471 = vpack.c.b16 %v1455, %v1454
    %1488 = vmatpush.bf16.msra.mxu0 %v1463
    %1489 = vmatpush.bf16.msra.mxu0 %v1462
    %1490 = vmatpush.bf16.msra.mxu0 %v1461
    %1491 = vmatpush.bf16.msra.mxu0 %v1460
    %1492 = vmatpush.bf16.msra.mxu0 %v1459
    %1493 = vmatpush.bf16.msra.mxu0 %v1458
    %1494 = vmatpush.bf16.msra.mxu0 %v1457
    %1495 = vmatpush.bf16.msra.mxu0 %v1456
    %1496 = vmatmul.bf16.gmra.mxu0 %v1340
    %v1497 = vpop.f32.mrf.mxu0
    %v1498 = vadd.f32 %v1390, %v1497
    %v1499 = vpop.f32.mrf.mxu0
    %v1500 = vadd.f32 %v1390, %v1499
    %1501 = vmatmul.bf16.gmra.mxu0 %v1342
    %v1502 = vpop.f32.mrf.mxu0
    %v1503 = vadd.f32 %v1390, %v1502
    %v1504 = vpop.f32.mrf.mxu0
    %v1505 = vadd.f32 %v1390, %v1504
    %1506 = vmatmul.bf16.gmra.mxu0 %v1344
    %v1507 = vpop.f32.mrf.mxu0
    %v1508 = vadd.f32 %v1390, %v1507
    %v1509 = vpop.f32.mrf.mxu0
    %v1510 = vadd.f32 %v1390, %v1509
    %1511 = vmatmul.bf16.gmra.mxu0 %v1346
    %v1512 = vpop.f32.mrf.mxu0
    %v1513 = vadd.f32 %v1390, %v1512
    %v1514 = vpop.f32.mrf.mxu0
    %v1515 = vadd.f32 %v1390, %v1514
    %1516 = vmatmul.bf16.gmra.mxu0 %v1348
    %v1517 = vpop.f32.mrf.mxu0
    %v1518 = vadd.f32 %v1390, %v1517
    %v1519 = vpop.f32.mrf.mxu0
    %v1520 = vadd.f32 %v1390, %v1519
    %1521 = vmatmul.bf16.gmra.mxu0 %v1350
    %v1522 = vpop.f32.mrf.mxu0
    %v1523 = vadd.f32 %v1390, %v1522
    %v1524 = vpop.f32.mrf.mxu0
    %v1525 = vadd.f32 %v1390, %v1524
    %1526 = vmatmul.bf16.gmra.mxu0 %v1352
    %v1527 = vpop.f32.mrf.mxu0
    %v1528 = vadd.f32 %v1390, %v1527
    %v1529 = vpop.f32.mrf.mxu0
    %v1530 = vadd.f32 %v1390, %v1529
    %1531 = vmatmul.bf16.gmra.mxu0 %v1354
    %v1532 = vpop.f32.mrf.mxu0
    %v1533 = vadd.f32 %v1390, %v1532
    %v1534 = vpop.f32.mrf.mxu0
    %v1535 = vadd.f32 %v1390, %v1534
    %1536 = vdwg.mxu0
    %1537 = vmatpush.bf16.msra.mxu0 %v1471
    %1538 = vmatpush.bf16.msra.mxu0 %v1470
    %1539 = vmatpush.bf16.msra.mxu0 %v1469
    %1540 = vmatpush.bf16.msra.mxu0 %v1468
    %1541 = vmatpush.bf16.msra.mxu0 %v1467
    %1542 = vmatpush.bf16.msra.mxu0 %v1466
    %1543 = vmatpush.bf16.msra.mxu0 %v1465
    %1544 = vmatpush.bf16.msra.mxu0 %v1464
    %1545 = vmatmul.bf16.gmra.mxu0 %v1341
    %v1546 = vpop.f32.mrf.mxu0
    %v1547 = vadd.f32 %v1498, %v1546
    %v1548 = vpop.f32.mrf.mxu0
    %v1549 = vadd.f32 %v1500, %v1548
    %1550 = vmatmul.bf16.gmra.mxu0 %v1343
    %v1551 = vpop.f32.mrf.mxu0
    %v1552 = vadd.f32 %v1503, %v1551
    %v1553 = vpop.f32.mrf.mxu0
    %v1554 = vadd.f32 %v1505, %v1553
    %1555 = vmatmul.bf16.gmra.mxu0 %v1345
    %v1556 = vpop.f32.mrf.mxu0
    %v1557 = vadd.f32 %v1508, %v1556
    %v1558 = vpop.f32.mrf.mxu0
    %v1559 = vadd.f32 %v1510, %v1558
    %1560 = vmatmul.bf16.gmra.mxu0 %v1347
    %v1561 = vpop.f32.mrf.mxu0
    %v1562 = vadd.f32 %v1513, %v1561
    %v1563 = vpop.f32.mrf.mxu0
    %v1564 = vadd.f32 %v1515, %v1563
    %1565 = vmatmul.bf16.gmra.mxu0 %v1349
    %v1566 = vpop.f32.mrf.mxu0
    %v1567 = vadd.f32 %v1518, %v1566
    %v1568 = vpop.f32.mrf.mxu0
    %v1569 = vadd.f32 %v1520, %v1568
    %1570 = vmatmul.bf16.gmra.mxu0 %v1351
    %v1571 = vpop.f32.mrf.mxu0
    %v1572 = vadd.f32 %v1523, %v1571
    %v1573 = vpop.f32.mrf.mxu0
    %v1574 = vadd.f32 %v1525, %v1573
    %1575 = vmatmul.bf16.gmra.mxu0 %v1353
    %v1576 = vpop.f32.mrf.mxu0
    %v1577 = vadd.f32 %v1528, %v1576
    %v1578 = vpop.f32.mrf.mxu0
    %v1579 = vadd.f32 %v1530, %v1578
    %1580 = vmatmul.bf16.gmra.mxu0 %v1355
    %v1581 = vpop.f32.mrf.mxu0
    %v1582 = vadd.f32 %v1533, %v1581
    %v1583 = vpop.f32.mrf.mxu0
    %v1584 = vadd.f32 %v1535, %v1583
    %1585 = vdwg.mxu0
    %v1586 = vmax.f32 %v1547, 0.0
    %v1587 = vmax.f32 %v1549, 0.0
    %v1588 = vmax.f32 %v1552, 0.0
    %v1589 = vmax.f32 %v1554, 0.0
    %v1590 = vmax.f32 %v1557, 0.0
    %v1591 = vmax.f32 %v1559, 0.0
    %v1592 = vmax.f32 %v1562, 0.0
    %v1593 = vmax.f32 %v1564, 0.0
    %v1594 = vmax.f32 %v1567, 0.0
    %v1595 = vmax.f32 %v1569, 0.0
    %v1596 = vmax.f32 %v1572, 0.0
    %v1597 = vmax.f32 %v1574, 0.0
    %v1598 = vmax.f32 %v1577, 0.0
    %v1599 = vmax.f32 %v1579, 0.0
    %v1600 = vmax.f32 %v1582, 0.0
    %v1601 = vmax.f32 %v1584, 0.0
    %v1602 = vpack.c.bf16 %v1587, %v1586
    %v1603 = vpack.c.bf16 %v1589, %v1588
    %v1604 = vpack.c.bf16 %v1591, %v1590
    %v1605 = vpack.c.bf16 %v1593, %v1592
    %v1606 = vpack.c.bf16 %v1595, %v1594
    %v1607 = vpack.c.bf16 %v1597, %v1596
    %v1608 = vpack.c.bf16 %v1599, %v1598
    %v1609 = vpack.c.bf16 %v1601, %v1600
    %v1610 = vld [vmem:[%s7] sm:$0xf]
    %v1611 = vld [vmem:[%s7 + $0x4] sm:$0xf]
    %v1612 = vld [vmem:[%s7 + $0x8] sm:$0xf]
    %v1613 = vld [vmem:[%s7 + $0xc] sm:$0xf]
    %v1614 = vld [vmem:[%s7 + $0x10] sm:$0xf]
    %v1615 = vld [vmem:[%s7 + $0x14] sm:$0xf]
    %v1616 = vld [vmem:[%s7 + $0x18] sm:$0xf]
    %v1617 = vld [vmem:[%s7 + $0x1c] sm:$0xf]
    %v1618 = vld [vmem:[%s7 + $0x20] sm:$0xf]
    %v1619 = vld [vmem:[%s7 + $0x24] sm:$0xf]
    %v1620 = vld [vmem:[%s7 + $0x28] sm:$0xf]
    %v1621 = vld [vmem:[%s7 + $0x2c] sm:$0xf]
    %v1622 = vld [vmem:[%s7 + $0x30] sm:$0xf]
    %v1623 = vld [vmem:[%s7 + $0x34] sm:$0xf]
    %v1624 = vld [vmem:[%s7 + $0x38] sm:$0xf]
    %v1625 = vld [vmem:[%s7 + $0x3c] sm:$0xf]
    %v1626 = vld [vmem:[%s8] sm:$0x1]
    %v1628 = vperm.slane %v1626, 0
    %v1646 = vunpack.c.l.b16 %v1610
    %v1647 = vunpack.c.l.b16 %v1611
    %v1648 = vunpack.c.l.b16 %v1612
    %v1649 = vunpack.c.l.b16 %v1613
    %v1650 = vunpack.c.l.b16 %v1614
    %v1651 = vunpack.c.l.b16 %v1615
    %v1652 = vunpack.c.l.b16 %v1616
    %v1653 = vunpack.c.l.b16 %v1617
    %v1654 = vunpack.c.l.b16 %v1618
    %v1655 = vunpack.c.l.b16 %v1619
    %v1656 = vunpack.c.l.b16 %v1620
    %v1657 = vunpack.c.l.b16 %v1621
    %v1658 = vunpack.c.l.b16 %v1622
    %v1659 = vunpack.c.l.b16 %v1623
    %v1660 = vunpack.c.l.b16 %v1624
    %v1661 = vunpack.c.l.b16 %v1625
    %v1662 = vpack.c.b16 %v1647, %v1646
    %v1663 = vpack.c.b16 %v1649, %v1648
    %v1664 = vpack.c.b16 %v1651, %v1650
    %v1665 = vpack.c.b16 %v1653, %v1652
    %v1666 = vpack.c.b16 %v1655, %v1654
    %v1667 = vpack.c.b16 %v1657, %v1656
    %v1668 = vpack.c.b16 %v1659, %v1658
    %v1669 = vpack.c.b16 %v1661, %v1660
    %1678 = vmatpush.bf16.msra.mxu0 %v1669
    %1679 = vmatpush.bf16.msra.mxu0 %v1668
    %1680 = vmatpush.bf16.msra.mxu0 %v1667
    %1681 = vmatpush.bf16.msra.mxu0 %v1666
    %1682 = vmatpush.bf16.msra.mxu0 %v1665
    %1683 = vmatpush.bf16.msra.mxu0 %v1664
    %1684 = vmatpush.bf16.msra.mxu0 %v1663
    %1685 = vmatpush.bf16.msra.mxu0 %v1662
    %1686 = vmatmul.bf16.gmra.mxu0 %v1602
    %v1687 = vpop.f32.mrf.mxu0
    %v1688 = vadd.f32 %v1628, %v1687
    %v1689 = vpop.f32.mrf.mxu0
    %v1690 = vadd.f32 %v1628, %v1689
    %1691 = vmatmul.bf16.gmra.mxu0 %v1603
    %v1692 = vpop.f32.mrf.mxu0
    %v1693 = vadd.f32 %v1628, %v1692
    %v1694 = vpop.f32.mrf.mxu0
    %v1695 = vadd.f32 %v1628, %v1694
    %1696 = vmatmul.bf16.gmra.mxu0 %v1604
    %v1697 = vpop.f32.mrf.mxu0
    %v1698 = vadd.f32 %v1628, %v1697
    %v1699 = vpop.f32.mrf.mxu0
    %v1700 = vadd.f32 %v1628, %v1699
    %1701 = vmatmul.bf16.gmra.mxu0 %v1605
    %v1702 = vpop.f32.mrf.mxu0
    %v1703 = vadd.f32 %v1628, %v1702
    %v1704 = vpop.f32.mrf.mxu0
    %v1705 = vadd.f32 %v1628, %v1704
    %1706 = vmatmul.bf16.gmra.mxu0 %v1606
    %v1707 = vpop.f32.mrf.mxu0
    %v1708 = vadd.f32 %v1628, %v1707
    %v1709 = vpop.f32.mrf.mxu0
    %v1710 = vadd.f32 %v1628, %v1709
    %1711 = vmatmul.bf16.gmra.mxu0 %v1607
    %v1712 = vpop.f32.mrf.mxu0
    %v1713 = vadd.f32 %v1628, %v1712
    %v1714 = vpop.f32.mrf.mxu0
    %v1715 = vadd.f32 %v1628, %v1714
    %1716 = vmatmul.bf16.gmra.mxu0 %v1608
    %v1717 = vpop.f32.mrf.mxu0
    %v1718 = vadd.f32 %v1628, %v1717
    %v1719 = vpop.f32.mrf.mxu0
    %v1720 = vadd.f32 %v1628, %v1719
    %1721 = vmatmul.bf16.gmra.mxu0 %v1609
    %v1722 = vpop.f32.mrf.mxu0
    %v1723 = vadd.f32 %v1628, %v1722
    %v1724 = vpop.f32.mrf.mxu0
    %v1725 = vadd.f32 %v1628, %v1724
    %1726 = vdwg.mxu0
    %v1727 = vpack.c.bf16 %v1688, %v1688
    %v1728 = vpack.c.bf16 %v1690, %v1690
    %v1729 = vpack.c.bf16 %v1693, %v1693
    %v1730 = vpack.c.bf16 %v1695, %v1695
    %v1731 = vpack.c.bf16 %v1698, %v1698
    %v1732 = vpack.c.bf16 %v1700, %v1700
    %v1733 = vpack.c.bf16 %v1703, %v1703
    %v1734 = vpack.c.bf16 %v1705, %v1705
    %v1735 = vpack.c.bf16 %v1708, %v1708
    %v1736 = vpack.c.bf16 %v1710, %v1710
    %v1737 = vpack.c.bf16 %v1713, %v1713
    %v1738 = vpack.c.bf16 %v1715, %v1715
    %v1739 = vpack.c.bf16 %v1718, %v1718
    %v1740 = vpack.c.bf16 %v1720, %v1720
    %v1741 = vpack.c.bf16 %v1723, %v1723
    %v1742 = vpack.c.bf16 %v1725, %v1725
    %1743 = vst [vmem:[#allocation8] sm:$0xf] %v1727
    %1744 = vst [vmem:[#allocation8 + $0x4] sm:$0xf] %v1728
    %1745 = vst [vmem:[#allocation8 + $0x8] sm:$0xf] %v1729
    %1746 = vst [vmem:[#allocation8 + $0xc] sm:$0xf] %v1730
    %1747 = vst [vmem:[#allocation8 + $0x10] sm:$0xf] %v1731
    %1748 = vst [vmem:[#allocation8 + $0x14] sm:$0xf] %v1732
    %1749 = vst [vmem:[#allocation8 + $0x18] sm:$0xf] %v1733
    %1750 = vst [vmem:[#allocation8 + $0x1c] sm:$0xf] %v1734
    %1751 = vst [vmem:[#allocation8 + $0x20] sm:$0xf] %v1735
    %1752 = vst [vmem:[#allocation8 + $0x24] sm:$0xf] %v1736
    %1753 = vst [vmem:[#allocation8 + $0x28] sm:$0xf] %v1737
    %1754 = vst [vmem:[#allocation8 + $0x2c] sm:$0xf] %v1738
    %1755 = vst [vmem:[#allocation8 + $0x30] sm:$0xf] %v1739
    %1756 = vst [vmem:[#allocation8 + $0x34] sm:$0xf] %v1740
    %1757 = vst [vmem:[#allocation8 + $0x38] sm:$0xf] %v1741
    %1758 = vst [vmem:[#allocation8 + $0x3c] sm:$0xf] %v1742
    // Predicated region
    $region50: #{tpu_custom_call.1} parent=1 // pred_check
      _
    $region51: #{tpu_custom_call.1} parent=1 // pred_check_branch
      %1760 = sbr.rel (0) target = $region53
    $region52: #{tpu_custom_call.1} parent=1 // pred_region
      %1762 = vsyncadd [#allocation4], 0
      %s1763 = sshll.u32 [#allocation8], 4
      %s1764 = int_to_ptr.vmem [resolvable:$true] %s1763
      %s1765 = sshll.u32 %s9, 4
      %s1766 = int_to_ptr.hbm [resolvable:$true] %s1765
      %1771 = dma.vmem_to_hbm [thread:$0]  %s1764, 1024, %s1766, [#allocation4], 64, 64, 4
    $region53: #{tpu_custom_call.1} parent=1 // pred_fallthru
      _
    // Predicated region
    $region54: #{tpu_custom_call.1} parent=1 // pred_check
      _
    $region55: #{tpu_custom_call.1} parent=1 // pred_check_branch
      %1773 = sbr.rel (0) target = $region57
    $region56: #{tpu_custom_call.1} parent=1 // pred_region
      %1775 = dma.done [#allocation4], 1024
    $region57: #{tpu_custom_call.1} parent=1 // pred_fallthru
      _
    %1776 = vsyncpa [#allocation3], 1
    %1777 = vsyncpa [#allocation6], 1
    %1778 = vsyncpa [#allocation4], 1

</llo_original>
